<compile_context>
chip_gen: v6e
topology: v6e:2x2x1
jax: 0.10.0
libtpu: 0.0.40
codegen_flags: <defaults>
</compile_context>

<pallas_src>
import functools
import math

import jax
import jax.numpy as jnp
from jax.experimental import pallas as pl
from jax.experimental.pallas import tpu as pltpu


# ----------------------------- kernel helpers -------------------------------

def _gelu(x):
    # tanh-approximation gelu (as in PreSumm's PositionwiseFeedForward).
    return 0.5 * x * (1.0 + jnp.tanh(
        math.sqrt(2.0 / math.pi) * (x + 0.044715 * x * x * x)))


def _layer_norm(x, g, b, eps=1e-6):
    mu = jnp.mean(x, axis=-1, keepdims=True)
    var = jnp.mean((x - mu) ** 2, axis=-1, keepdims=True)
    return (x - mu) * jax.lax.rsqrt(var + eps) * g + b


# ------------------------------- the kernel ---------------------------------

def encoder_layer_kernel(
    xf_ref, mask_ref,
    ln1_g_ref, ln1_b_ref,
    wq_ref, bq_ref, wk_ref, bk_ref, wv_ref, bv_ref, wo_ref, bo_ref,
    ln2_g_ref, ln2_b_ref,
    w1_ref, b1_ref, w2_ref, b2_ref,
    out_ref,
    kt_ref, vh_ref,
    *, heads, apply_ln, use_einshape):
    f32, bf16 = jnp.float32, jnp.bfloat16
    qi = pl.program_id(1)
    S, D = xf_ref.shape
    tq = out_ref.shape[0]
    dk = D // heads

    # ---- once per batch row: full-seq LN + K/V projections into VMEM scratch.
    # The qi axis is "arbitrary" (sequential, in order), so this scratch is
    # valid for the remaining nq-1 query tiles of the same batch row.
    @pl.when(qi == 0)
    def _():
        x_full = xf_ref[...].astype(f32)                          # (S, D)
        if apply_ln:
            xn = _layer_norm(x_full, ln1_g_ref[...], ln1_b_ref[...])
        else:
            xn = x_full
        xn = xn.astype(bf16)
        k = jnp.dot(xn, wk_ref[...], preferred_element_type=f32) + bk_ref[...]
        v = jnp.dot(xn, wv_ref[...], preferred_element_type=f32) + bv_ref[...]
        # Per-head cache layouts (built once per batch row, cost amortized
        # over all query tiles; only 2-D slices / 2-D transposes are used):
        #   K^T as (H, dk, S): lane-dense in S, MXU-native for Q @ K^T.
        #   V   as (H, S, dk): contraction dim S leads, MXU-native for P @ V.
        for h in range(heads):
            sl = slice(h * dk, (h + 1) * dk)
            kt_ref[h] = k[:, sl].T.astype(bf16)
            vh_ref[h] = v[:, sl].astype(bf16)

    # Key-padding-mask bias (1.0 => masked), computed once per tile.
    mask = mask_ref[...]                                          # (1, S)
    bias = jnp.where(mask > 0.5, jnp.float32(-1e18),
                     jnp.float32(0.0))[None]                      # (1, 1, S)

    # ---- query tile: sliced from the RESIDENT full-seq block (no extra DMA).
    row0 = pl.multiple_of(qi * tq, tq)          # tq is a multiple of 8 (or S)
    x_q = xf_ref[pl.ds(row0, tq), :].astype(f32)                  # (tq, D)
    if apply_ln:
        xn_q = _layer_norm(x_q, ln1_g_ref[...], ln1_b_ref[...])
    else:
        xn_q = x_q

    q = jnp.dot(xn_q.astype(bf16), wq_ref[...],
                preferred_element_type=f32) + bq_ref[...]
    q = q * jnp.float32(1.0 / math.sqrt(dk))    # fold 1/sqrt(dk) into Q once

    # Head split: one lane-layout-aware einshape (XLU) instead of H slice/stack
    # copies.  The slice/stack form is kept as a compatibility fallback.
    if use_einshape:
        qh = pltpu.einshape("q(hd)->hqd", q, h=heads, d=dk).astype(bf16)
    else:
        qh = jnp.stack([q[:, h * dk:(h + 1) * dk] for h in range(heads)],
                       axis=0).astype(bf16)                       # (H, tq, dk)

    # QK^T against the cached, pre-transposed K: contraction is MXU-native.
    scores = jnp.einsum("hqd,hds->hqs", qh, kt_ref[...],
                        preferred_element_type=f32)               # (H, tq, S)
    scores = scores + bias

    # Softmax in f32.  Rows whose keys are ALL masked give a uniform softmax
    # (matches the additive -1e18 bias of the reference) — do not "fix".
    m = jnp.max(scores, axis=-1, keepdims=True)
    p = jnp.exp(scores - m)
    l = jnp.sum(p, axis=-1, keepdims=True)                        # (H, tq, 1)
    ctx_h = jnp.einsum("hqs,hsd->hqd", p.astype(bf16), vh_ref[...],
                       preferred_element_type=f32)                # (H, tq, dk)
    # Fold 1/l into the small context, not the (H, tq, S) probabilities.
    ctx_h = ctx_h * pl.reciprocal(l, approx=True)

    if use_einshape:
        ctx = pltpu.einshape("hqd->q(hd)", ctx_h)                 # (tq, D)
    else:
        ctx = jnp.concatenate([ctx_h[h] for h in range(heads)], axis=-1)

    attn = jnp.dot(ctx.astype(bf16), wo_ref[...],
                   preferred_element_type=f32) + bo_ref[...]

    # Residual uses the ORIGINAL inputs (not input_norm); dropout == identity.
    out1 = attn + x_q

    # --- PositionwiseFeedForward: LN -> W1 -> gelu -> W2 -> residual ---------
    hdn = _layer_norm(out1, ln2_g_ref[...], ln2_b_ref[...])
    h1 = jnp.dot(hdn.astype(bf16), w1_ref[...],
                 preferred_element_type=f32) + b1_ref[...]
    h1 = _gelu(h1)
    ff = jnp.dot(h1.astype(bf16), w2_ref[...],
                 preferred_element_type=f32) + b2_ref[...]

    out_ref[...] = (ff + out1).astype(out_ref.dtype)


# ------------------------------ JAX wrapper ----------------------------------

def transformer_encoder_layer(iter_, inputs, mask, params, heads, *, q_block=None):
    B, S, D = inputs.shape
    d_ff = params["w1"].shape[0]
    assert D % heads == 0
    dk = D // heads
    f32, bf16 = jnp.float32, jnp.bfloat16

    # --- per-generation VMEM budget / default query-tile size ----------------
    phys_vmem = 64 << 20            # conservative floor (v7x) if query fails
    chip = ""
    try:
        info = pltpu.get_tpu_info()
        phys_vmem = int(getattr(info, "vmem_capacity_bytes", phys_vmem))
        chip = str(getattr(info, "chip_version", ""))
    except Exception:
        pass
    vmem_budget = max(int(0.75 * phys_vmem), 32 << 20)
    if q_block is None:
        # v6e (128 MiB VMEM, 256-wide MXU) -> 256-row tiles;
        # v5e (128-wide MXU) and v7x (64 MiB VMEM) -> 128-row tiles.
        q_block = 256 if ("6" in chip and phys_vmem > (64 << 20)) else 128

    # Weights pre-transposed to (in, out), cast to bf16 (MXU-native).  Biases
    # and LayerNorm params stay f32 (added after f32 accumulation).
    weights = [
        params["ln1_g"].reshape(1, D).astype(f32),
        params["ln1_b"].reshape(1, D).astype(f32),
        params["wq"].T.astype(bf16), params["bq"].reshape(1, D).astype(f32),
        params["wk"].T.astype(bf16), params["bk"].reshape(1, D).astype(f32),
        params["wv"].T.astype(bf16), params["bv"].reshape(1, D).astype(f32),
        params["wo"].T.astype(bf16), params["bo"].reshape(1, D).astype(f32),
        params["ln2_g"].reshape(1, D).astype(f32),
        params["ln2_b"].reshape(1, D).astype(f32),
        params["w1"].T.astype(bf16), params["b1"].reshape(1, d_ff).astype(f32),
        params["w2"].T.astype(bf16), params["b2"].reshape(1, D).astype(f32),
    ]
    w_bytes = sum(int(w.size) * w.dtype.itemsize for w in weights)
    mask3 = mask.reshape(B, 1, S).astype(f32)
    inputs_bf16 = inputs.astype(bf16)       # bf16 activation I/O (halves HBM reads)

    # --- query-tile size: largest multiple-of-8 divisor of S <= limit --------
    def pick_tq(limit):
        for cand in range(min(S, limit), 7, -1):
            if S % cand == 0 and cand % 8 == 0:
                return cand
        return S                     # no such divisor: one full-S tile (legal)

    def vmem_estimate(tq, single_buf_w):
        wbuf = w_bytes * (1 if single_buf_w else 2)
        io = 2 * (S * D * 2) + 2 * (4 * S) + 2 * (tq * D * 4)   # xf / mask / out
        scratch = 2 * S * D * 2                                 # K^T + V bf16 cache
        live = (2 * heads * tq * S * 4      # scores + probs (f32)
                + 4 * tq * D * 4            # q / ctx / residual / LN temps
                + tq * d_ff * 4             # FFN hidden
                + 2 * S * D * 4)            # K/V f32 intermediates at qi == 0
        return wbuf + io + scratch + live

    tq = pick_tq(q_block)
    while (tq % 8 == 0) and tq > 8 and vmem_estimate(tq, True) > vmem_budget:
        smaller = pick_tq(tq // 2)
        if smaller >= tq:
            break
        tq = smaller
    nq = S // tq
    vmem_limit = vmem_budget

    # Advisory cost estimate (K/V + full-seq LN now counted once per batch row).
    flops = int(B * (2 * 2 * S * D * D            # K, V projections
                     + 2 * 2 * S * D * D          # Q + output projections
                     + 2 * 2 * S * S * D          # QK^T + PV (all heads)
                     + 2 * 2 * S * D * d_ff))     # FFN
    transcendentals = int(B * (heads * S * S + S * d_ff + 4 * S))
    bytes_accessed = int(inputs_bf16.nbytes + mask3.nbytes + w_bytes
                         + B * S * D * 4)

    def build(fast):
        def wspec(arr):
            nd = arr.ndim
            kw = {"pipeline_mode": pl.Buffered(1)} if fast else {}
            # Grid-invariant weight blocks: single buffer halves resident VMEM.
            return pl.BlockSpec(arr.shape, lambda b, qi, _nd=nd: (0,) * _nd, **kw)

        in_specs = (
            [pl.BlockSpec((pl.Squeezed(), S, D), lambda b, qi: (b, 0, 0)),   # full seq
             pl.BlockSpec((pl.Squeezed(), 1, S), lambda b, qi: (b, 0, 0))]   # mask row
            + [wspec(w) for w in weights])
        out_specs = pl.BlockSpec((pl.Squeezed(), tq, D), lambda b, qi: (b, qi, 0))

        kern = functools.partial(encoder_layer_kernel, heads=heads,
                                 apply_ln=(iter_ != 0), use_einshape=fast)
        return pl.pallas_call(
            kern,
            out_shape=jax.ShapeDtypeStruct((B, S, D), f32),
            grid=(B, nq),
            in_specs=in_specs,
            out_specs=out_specs,
            scratch_shapes=[pltpu.VMEM((heads, dk, S), bf16),    # K^T cache
                            pltpu.VMEM((heads, S, dk), bf16)],   # V cache
            compiler_params=pltpu.CompilerParams(
                dimension_semantics=("parallel", "arbitrary"),
                vmem_limit_bytes=vmem_limit),
            cost_estimate=pl.CostEstimate(flops=flops,
                                          transcendentals=transcendentals,
                                          bytes_accessed=bytes_accessed),
        )

    try:
        out = jax.block_until_ready(build(True)(inputs_bf16, mask3, *weights))
    except Exception:
        # Compatibility fallback: default double-buffered weights and
        # slice/stack head split (pl.Buffered(1) / pltpu.einshape support can
        # vary across jax versions); all other optimizations are kept.
        out = jax.block_until_ready(build(False)(inputs_bf16, mask3, *weights))
    return out


# -------------------------- pure-JAX reference -------------------------------

def reference(iter_, inputs, mask, p, heads):
    B, S, D = inputs.shape
    dk = D // heads

    def ln(x, g, b):
        mu = x.mean(-1, keepdims=True)
        var = ((x - mu) ** 2).mean(-1, keepdims=True)
        return (x - mu) / jnp.sqrt(var + 1e-6) * g + b

    x = inputs
    xn = ln(x, p["ln1_g"], p["ln1_b"]) if iter_ != 0 else x
    q = xn @ p["wq"].T + p["bq"]
    k = xn @ p["wk"].T + p["bk"]
    v = xn @ p["wv"].T + p["bv"]
    qh = q.reshape(B, S, heads, dk).transpose(0, 2, 1, 3) / math.sqrt(dk)
    kh = k.reshape(B, S, heads, dk).transpose(0, 2, 1, 3)
    vh = v.reshape(B, S, heads, dk).transpose(0, 2, 1, 3)
    scores = qh @ kh.transpose(0, 1, 3, 2)                       # (B,H,S,S)
    scores = jnp.where(mask[:, None, None, :] > 0.5, -1e18, scores)
    pa = jax.nn.softmax(scores, axis=-1)
    ctx = (pa @ vh).transpose(0, 2, 1, 3).reshape(B, S, D)
    attn = ctx @ p["wo"].T + p["bo"]
    out1 = attn + x
    h = ln(out1, p["ln2_g"], p["ln2_b"])
    h = _gelu(h @ p["w1"].T + p["b1"])
    return (h @ p["w2"].T + p["b2"]) + out1


# --------------------------------- main ---------------------------------------

def init_params(key, d_model, heads, d_ff):
    ks = jax.random.split(key, 8)
    scale = 0.02
    return {
        "ln1_g": jnp.ones((d_model,), jnp.float32),
        "ln1_b": jnp.zeros((d_model,), jnp.float32),
        "wq": scale * jax.random.normal(ks[0], (d_model, d_model), jnp.float32),
        "bq": jnp.zeros((d_model,), jnp.float32),
        "wk": scale * jax.random.normal(ks[1], (d_model, d_model), jnp.float32),
        "bk": jnp.zeros((d_model,), jnp.float32),
        "wv": scale * jax.random.normal(ks[2], (d_model, d_model), jnp.float32),
        "bv": jnp.zeros((d_model,), jnp.float32),
        "wo": scale * jax.random.normal(ks[3], (d_model, d_model), jnp.float32),
        "bo": jnp.zeros((d_model,), jnp.float32),
        "ln2_g": jnp.ones((d_model,), jnp.float32),
        "ln2_b": jnp.zeros((d_model,), jnp.float32),
        "w1": scale * jax.random.normal(ks[4], (d_ff, d_model), jnp.float32),
        "b1": 0.01 * jnp.ones((d_ff,), jnp.float32),
        "w2": scale * jax.random.normal(ks[5], (d_model, d_ff), jnp.float32),
        "b2": 0.01 * jnp.ones((d_model,), jnp.float32),
    }


if __name__ == "__main__":
    B, S, d_model, heads, d_ff = 2, 8, 32, 4, 64
    key = jax.random.PRNGKey(0)
    k_in, k_p = jax.random.split(key)

    inputs = jax.random.normal(k_in, (B, S, d_model), jnp.float32)
    # key-padding mask: 1.0 => masked (padding); pad last two positions of batch 1
    mask = jnp.zeros((B, S), jnp.float32).at[1, -2:].set(1.0)
    params = init_params(k_p, d_model, heads, d_ff)

    iter_ = 1  # iter != 0 -> apply the pre-attention LayerNorm branch
    out = transformer_encoder_layer(iter_, inputs, mask, params, heads)
    out = jax.block_until_ready(out)

    ref = reference(iter_, inputs, mask, params, heads)
    assert out.shape == (B, S, d_model)
    # bf16 activation I/O + bf16 matmul operands + approx reciprocal vs f32 ref.
    max_err = float(jnp.max(jnp.abs(out - ref)))
    assert jnp.allclose(out, ref, atol=2e-2, rtol=2e-2), max_err

    print("KERNEL_OK")
</pallas_src>

<mosaic_0001>
module attributes {stable_mosaic.version = 11 : i64} {
  func.func @encoder_layer_kernel(%arg0: i32, %arg1: i32, %arg2: memref<1x8x32xbf16, #tpu.memory_space<vmem>>, %arg3: memref<1x1x8xf32, #tpu.memory_space<vmem>>, %arg4: memref<1x32xf32, #tpu.memory_space<vmem>>, %arg5: memref<1x32xf32, #tpu.memory_space<vmem>>, %arg6: memref<32x32xbf16, #tpu.memory_space<vmem>>, %arg7: memref<1x32xf32, #tpu.memory_space<vmem>>, %arg8: memref<32x32xbf16, #tpu.memory_space<vmem>>, %arg9: memref<1x32xf32, #tpu.memory_space<vmem>>, %arg10: memref<32x32xbf16, #tpu.memory_space<vmem>>, %arg11: memref<1x32xf32, #tpu.memory_space<vmem>>, %arg12: memref<32x32xbf16, #tpu.memory_space<vmem>>, %arg13: memref<1x32xf32, #tpu.memory_space<vmem>>, %arg14: memref<1x32xf32, #tpu.memory_space<vmem>>, %arg15: memref<1x32xf32, #tpu.memory_space<vmem>>, %arg16: memref<32x64xbf16, #tpu.memory_space<vmem>>, %arg17: memref<1x64xf32, #tpu.memory_space<vmem>>, %arg18: memref<64x32xbf16, #tpu.memory_space<vmem>>, %arg19: memref<1x32xf32, #tpu.memory_space<vmem>>, %arg20: memref<1x8x32xf32, #tpu.memory_space<vmem>>, %arg21: memref<4x8x8xbf16, #tpu.memory_space<vmem>>, %arg22: memref<4x8x8xbf16, #tpu.memory_space<vmem>>) attributes {dimension_semantics = [#tpu.dimension_semantics<parallel>, #tpu.dimension_semantics<arbitrary>], iteration_bounds = array<i64: 2, 1>, scalar_prefetch = 0 : i64, scratch_operands = 2 : i64, tpu.core_type = #tpu.core_type<tc>, window_params = [{transform_indices = @transform_0, window_bounds = array<i64: 1, 8, 32>}, {transform_indices = @transform_1, window_bounds = array<i64: 1, 1, 8>}, {pipeline_mode = #tpu.pipeline_mode<synchronous>, transform_indices = @transform_2, window_bounds = array<i64: 1, 32>}, {pipeline_mode = #tpu.pipeline_mode<synchronous>, transform_indices = @transform_3, window_bounds = array<i64: 1, 32>}, {pipeline_mode = #tpu.pipeline_mode<synchronous>, transform_indices = @transform_4, window_bounds = array<i64: 32, 32>}, {pipeline_mode = #tpu.pipeline_mode<synchronous>, transform_indices = @transform_5, window_bounds = array<i64: 1, 32>}, {pipeline_mode = #tpu.pipeline_mode<synchronous>, transform_indices = @transform_6, window_bounds = array<i64: 32, 32>}, {pipeline_mode = #tpu.pipeline_mode<synchronous>, transform_indices = @transform_7, window_bounds = array<i64: 1, 32>}, {pipeline_mode = #tpu.pipeline_mode<synchronous>, transform_indices = @transform_8, window_bounds = array<i64: 32, 32>}, {pipeline_mode = #tpu.pipeline_mode<synchronous>, transform_indices = @transform_9, window_bounds = array<i64: 1, 32>}, {pipeline_mode = #tpu.pipeline_mode<synchronous>, transform_indices = @transform_10, window_bounds = array<i64: 32, 32>}, {pipeline_mode = #tpu.pipeline_mode<synchronous>, transform_indices = @transform_11, window_bounds = array<i64: 1, 32>}, {pipeline_mode = #tpu.pipeline_mode<synchronous>, transform_indices = @transform_12, window_bounds = array<i64: 1, 32>}, {pipeline_mode = #tpu.pipeline_mode<synchronous>, transform_indices = @transform_13, window_bounds = array<i64: 1, 32>}, {pipeline_mode = #tpu.pipeline_mode<synchronous>, transform_indices = @transform_14, window_bounds = array<i64: 32, 64>}, {pipeline_mode = #tpu.pipeline_mode<synchronous>, transform_indices = @transform_15, window_bounds = array<i64: 1, 64>}, {pipeline_mode = #tpu.pipeline_mode<synchronous>, transform_indices = @transform_16, window_bounds = array<i64: 64, 32>}, {pipeline_mode = #tpu.pipeline_mode<synchronous>, transform_indices = @transform_17, window_bounds = array<i64: 1, 32>}, {transform_indices = @transform_18, window_bounds = array<i64: 1, 8, 32>}]} {
    %c0_i32 = arith.constant 0 : i32
    %0 = arith.cmpi eq, %arg1, %c0_i32 : i32
    %1 = arith.extui %0 : i1 to i32
    %c0_i32_0 = arith.constant 0 : i32
    %2 = arith.cmpi ne, %1, %c0_i32_0 : i32
    scf.if %2 {
      %c0_63 = arith.constant 0 : index
      %c0_64 = arith.constant 0 : index
      %c0_65 = arith.constant 0 : index
      %145 = vector.load %arg2[%c0_63, %c0_64, %c0_65] : memref<1x8x32xbf16, #tpu.memory_space<vmem>>, vector<1x8x32xbf16>
      %146 = vector.shape_cast %145 : vector<1x8x32xbf16> to vector<8x32xbf16>
      %147 = arith.extf %146 : vector<8x32xbf16> to vector<8x32xf32>
      %c0_66 = arith.constant 0 : index
      %c0_67 = arith.constant 0 : index
      %148 = vector.load %arg4[%c0_66, %c0_67] : memref<1x32xf32, #tpu.memory_space<vmem>>, vector<1x32xf32>
      %c0_68 = arith.constant 0 : index
      %c0_69 = arith.constant 0 : index
      %149 = vector.load %arg5[%c0_68, %c0_69] : memref<1x32xf32, #tpu.memory_space<vmem>>, vector<1x32xf32>
      %cst_70 = arith.constant dense<0.000000e+00> : vector<8xf32>
      %150 = vector.multi_reduction <add>, %147, %cst_70 [1] : vector<8x32xf32> to vector<8xf32>
      %151 = vector.shape_cast %150 : vector<8xf32> to vector<8x1xf32>
      %cst_71 = arith.constant 3.200000e+01 : f32
      %152 = vector.broadcast %cst_71 : f32 to vector<8x1xf32>
      %153 = arith.divf %151, %152 : vector<8x1xf32>
      %154 = vector.broadcast %153 : vector<8x1xf32> to vector<8x32xf32>
      %155 = arith.subf %147, %154 : vector<8x32xf32>
      %156 = arith.mulf %155, %155 : vector<8x32xf32>
      %cst_72 = arith.constant dense<0.000000e+00> : vector<8xf32>
      %157 = vector.multi_reduction <add>, %156, %cst_72 [1] : vector<8x32xf32> to vector<8xf32>
      %158 = vector.shape_cast %157 : vector<8xf32> to vector<8x1xf32>
      %cst_73 = arith.constant 3.200000e+01 : f32
      %159 = vector.broadcast %cst_73 : f32 to vector<8x1xf32>
      %160 = arith.divf %158, %159 : vector<8x1xf32>
      %161 = vector.broadcast %153 : vector<8x1xf32> to vector<8x32xf32>
      %162 = arith.subf %147, %161 : vector<8x32xf32>
      %cst_74 = arith.constant 9.99999997E-7 : f32
      %163 = vector.broadcast %cst_74 : f32 to vector<8x1xf32>
      %164 = arith.addf %160, %163 : vector<8x1xf32>
      %165 = math.rsqrt %164 : vector<8x1xf32>
      %166 = vector.broadcast %165 : vector<8x1xf32> to vector<8x32xf32>
      %167 = arith.mulf %162, %166 : vector<8x32xf32>
      %168 = vector.broadcast %148 : vector<1x32xf32> to vector<8x32xf32>
      %169 = arith.mulf %167, %168 : vector<8x32xf32>
      %170 = vector.broadcast %149 : vector<1x32xf32> to vector<8x32xf32>
      %171 = arith.addf %169, %170 : vector<8x32xf32>
      %172 = arith.truncf %171 : vector<8x32xf32> to vector<8x32xbf16>
      %c0_75 = arith.constant 0 : index
      %c0_76 = arith.constant 0 : index
      %173 = vector.load %arg8[%c0_75, %c0_76] : memref<32x32xbf16, #tpu.memory_space<vmem>>, vector<32x32xbf16>
      %cst_77 = arith.constant dense<0.000000e+00> : vector<8x32xf32>
      %174 = tpu.matmul %172, %173, %cst_77 {dimension_numbers = #tpu.dot_dimension_numbers<[1], [0], [0], [1], [0, 0, 1, 1], [], []>} : vector<8x32xbf16>, vector<32x32xbf16>, vector<8x32xf32> -> vector<8x32xf32>
      %c0_78 = arith.constant 0 : index
      %c0_79 = arith.constant 0 : index
      %175 = vector.load %arg9[%c0_78, %c0_79] : memref<1x32xf32, #tpu.memory_space<vmem>>, vector<1x32xf32>
      %176 = vector.broadcast %175 : vector<1x32xf32> to vector<8x32xf32>
      %177 = arith.addf %174, %176 : vector<8x32xf32>
      %c0_80 = arith.constant 0 : index
      %c0_81 = arith.constant 0 : index
      %178 = vector.load %arg10[%c0_80, %c0_81] : memref<32x32xbf16, #tpu.memory_space<vmem>>, vector<32x32xbf16>
      %cst_82 = arith.constant dense<0.000000e+00> : vector<8x32xf32>
      %179 = tpu.matmul %172, %178, %cst_82 {dimension_numbers = #tpu.dot_dimension_numbers<[1], [0], [0], [1], [0, 0, 1, 1], [], []>} : vector<8x32xbf16>, vector<32x32xbf16>, vector<8x32xf32> -> vector<8x32xf32>
      %c0_83 = arith.constant 0 : index
      %c0_84 = arith.constant 0 : index
      %180 = vector.load %arg11[%c0_83, %c0_84] : memref<1x32xf32, #tpu.memory_space<vmem>>, vector<1x32xf32>
      %181 = vector.broadcast %180 : vector<1x32xf32> to vector<8x32xf32>
      %182 = arith.addf %179, %181 : vector<8x32xf32>
      %183 = vector.extract_strided_slice %177 {offsets = [0, 0], sizes = [8, 8], strides = [1, 1]} : vector<8x32xf32> to vector<8x8xf32>
      %184 = tpu.transpose %183, [1, 0] : vector<8x8xf32> -> vector<8x8xf32>
      %185 = arith.truncf %184 : vector<8x8xf32> to vector<8x8xbf16>
      %c0_85 = arith.constant 0 : index
      %c0_86 = arith.constant 0 : index
      %c0_87 = arith.constant 0 : index
      %186 = vector.load %arg21[%c0_85, %c0_86, %c0_87] : memref<4x8x8xbf16, #tpu.memory_space<vmem>>, vector<1x8x8xbf16>
      %187 = vector.shape_cast %186 : vector<1x8x8xbf16> to vector<8x8xbf16>
      %188 = vector.shape_cast %185 : vector<8x8xbf16> to vector<1x8x8xbf16>
      tpu.vector_store %arg21[%c0_85, %c0_86, %c0_87], %188 {strides = array<i32>} : memref<4x8x8xbf16, #tpu.memory_space<vmem>>, vector<1x8x8xbf16>,
      %189 = vector.extract_strided_slice %182 {offsets = [0, 0], sizes = [8, 8], strides = [1, 1]} : vector<8x32xf32> to vector<8x8xf32>
      %190 = arith.truncf %189 : vector<8x8xf32> to vector<8x8xbf16>
      %c0_88 = arith.constant 0 : index
      %c0_89 = arith.constant 0 : index
      %c0_90 = arith.constant 0 : index
      %191 = vector.load %arg22[%c0_88, %c0_89, %c0_90] : memref<4x8x8xbf16, #tpu.memory_space<vmem>>, vector<1x8x8xbf16>
      %192 = vector.shape_cast %191 : vector<1x8x8xbf16> to vector<8x8xbf16>
      %193 = vector.shape_cast %190 : vector<8x8xbf16> to vector<1x8x8xbf16>
      tpu.vector_store %arg22[%c0_88, %c0_89, %c0_90], %193 {strides = array<i32>} : memref<4x8x8xbf16, #tpu.memory_space<vmem>>, vector<1x8x8xbf16>,
      %194 = vector.extract_strided_slice %177 {offsets = [0, 8], sizes = [8, 8], strides = [1, 1]} : vector<8x32xf32> to vector<8x8xf32>
      %195 = tpu.transpose %194, [1, 0] : vector<8x8xf32> -> vector<8x8xf32>
      %196 = arith.truncf %195 : vector<8x8xf32> to vector<8x8xbf16>
      %c1 = arith.constant 1 : index
      %c0_91 = arith.constant 0 : index
      %c0_92 = arith.constant 0 : index
      %197 = vector.load %arg21[%c1, %c0_91, %c0_92] : memref<4x8x8xbf16, #tpu.memory_space<vmem>>, vector<1x8x8xbf16>
      %198 = vector.shape_cast %197 : vector<1x8x8xbf16> to vector<8x8xbf16>
      %199 = vector.shape_cast %196 : vector<8x8xbf16> to vector<1x8x8xbf16>
      tpu.vector_store %arg21[%c1, %c0_91, %c0_92], %199 {strides = array<i32>} : memref<4x8x8xbf16, #tpu.memory_space<vmem>>, vector<1x8x8xbf16>,
      %200 = vector.extract_strided_slice %182 {offsets = [0, 8], sizes = [8, 8], strides = [1, 1]} : vector<8x32xf32> to vector<8x8xf32>
      %201 = arith.truncf %200 : vector<8x8xf32> to vector<8x8xbf16>
      %c1_93 = arith.constant 1 : index
      %c0_94 = arith.constant 0 : index
      %c0_95 = arith.constant 0 : index
      %202 = vector.load %arg22[%c1_93, %c0_94, %c0_95] : memref<4x8x8xbf16, #tpu.memory_space<vmem>>, vector<1x8x8xbf16>
      %203 = vector.shape_cast %202 : vector<1x8x8xbf16> to vector<8x8xbf16>
      %204 = vector.shape_cast %201 : vector<8x8xbf16> to vector<1x8x8xbf16>
      tpu.vector_store %arg22[%c1_93, %c0_94, %c0_95], %204 {strides = array<i32>} : memref<4x8x8xbf16, #tpu.memory_space<vmem>>, vector<1x8x8xbf16>,
      %205 = vector.extract_strided_slice %177 {offsets = [0, 16], sizes = [8, 8], strides = [1, 1]} : vector<8x32xf32> to vector<8x8xf32>
      %206 = tpu.transpose %205, [1, 0] : vector<8x8xf32> -> vector<8x8xf32>
      %207 = arith.truncf %206 : vector<8x8xf32> to vector<8x8xbf16>
      %c2 = arith.constant 2 : index
      %c0_96 = arith.constant 0 : index
      %c0_97 = arith.constant 0 : index
      %208 = vector.load %arg21[%c2, %c0_96, %c0_97] : memref<4x8x8xbf16, #tpu.memory_space<vmem>>, vector<1x8x8xbf16>
      %209 = vector.shape_cast %208 : vector<1x8x8xbf16> to vector<8x8xbf16>
      %210 = vector.shape_cast %207 : vector<8x8xbf16> to vector<1x8x8xbf16>
      tpu.vector_store %arg21[%c2, %c0_96, %c0_97], %210 {strides = array<i32>} : memref<4x8x8xbf16, #tpu.memory_space<vmem>>, vector<1x8x8xbf16>,
      %211 = vector.extract_strided_slice %182 {offsets = [0, 16], sizes = [8, 8], strides = [1, 1]} : vector<8x32xf32> to vector<8x8xf32>
      %212 = arith.truncf %211 : vector<8x8xf32> to vector<8x8xbf16>
      %c2_98 = arith.constant 2 : index
      %c0_99 = arith.constant 0 : index
      %c0_100 = arith.constant 0 : index
      %213 = vector.load %arg22[%c2_98, %c0_99, %c0_100] : memref<4x8x8xbf16, #tpu.memory_space<vmem>>, vector<1x8x8xbf16>
      %214 = vector.shape_cast %213 : vector<1x8x8xbf16> to vector<8x8xbf16>
      %215 = vector.shape_cast %212 : vector<8x8xbf16> to vector<1x8x8xbf16>
      tpu.vector_store %arg22[%c2_98, %c0_99, %c0_100], %215 {strides = array<i32>} : memref<4x8x8xbf16, #tpu.memory_space<vmem>>, vector<1x8x8xbf16>,
      %216 = vector.extract_strided_slice %177 {offsets = [0, 24], sizes = [8, 8], strides = [1, 1]} : vector<8x32xf32> to vector<8x8xf32>
      %217 = tpu.transpose %216, [1, 0] : vector<8x8xf32> -> vector<8x8xf32>
      %218 = arith.truncf %217 : vector<8x8xf32> to vector<8x8xbf16>
      %c3 = arith.constant 3 : index
      %c0_101 = arith.constant 0 : index
      %c0_102 = arith.constant 0 : index
      %219 = vector.load %arg21[%c3, %c0_101, %c0_102] : memref<4x8x8xbf16, #tpu.memory_space<vmem>>, vector<1x8x8xbf16>
      %220 = vector.shape_cast %219 : vector<1x8x8xbf16> to vector<8x8xbf16>
      %221 = vector.shape_cast %218 : vector<8x8xbf16> to vector<1x8x8xbf16>
      tpu.vector_store %arg21[%c3, %c0_101, %c0_102], %221 {strides = array<i32>} : memref<4x8x8xbf16, #tpu.memory_space<vmem>>, vector<1x8x8xbf16>,
      %222 = vector.extract_strided_slice %182 {offsets = [0, 24], sizes = [8, 8], strides = [1, 1]} : vector<8x32xf32> to vector<8x8xf32>
      %223 = arith.truncf %222 : vector<8x8xf32> to vector<8x8xbf16>
      %c3_103 = arith.constant 3 : index
      %c0_104 = arith.constant 0 : index
      %c0_105 = arith.constant 0 : index
      %224 = vector.load %arg22[%c3_103, %c0_104, %c0_105] : memref<4x8x8xbf16, #tpu.memory_space<vmem>>, vector<1x8x8xbf16>
      %225 = vector.shape_cast %224 : vector<1x8x8xbf16> to vector<8x8xbf16>
      %226 = vector.shape_cast %223 : vector<8x8xbf16> to vector<1x8x8xbf16>
      tpu.vector_store %arg22[%c3_103, %c0_104, %c0_105], %226 {strides = array<i32>} : memref<4x8x8xbf16, #tpu.memory_space<vmem>>, vector<1x8x8xbf16>,
    } else {
    }
    %c0 = arith.constant 0 : index
    %c0_1 = arith.constant 0 : index
    %c0_2 = arith.constant 0 : index
    %3 = vector.load %arg3[%c0, %c0_1, %c0_2] : memref<1x1x8xf32, #tpu.memory_space<vmem>>, vector<1x1x8xf32>
    %4 = vector.shape_cast %3 : vector<1x1x8xf32> to vector<1x8xf32>
    %cst = arith.constant 5.000000e-01 : f32
    %5 = vector.broadcast %cst : f32 to vector<1x8xf32>
    %6 = arith.cmpf ogt, %4, %5 : vector<1x8xf32>
    %cst_3 = arith.constant -9.99999984E+17 : f32
    %cst_4 = arith.constant 0.000000e+00 : f32
    %7 = vector.broadcast %cst_3 : f32 to vector<1x8xf32>
    %8 = vector.broadcast %cst_4 : f32 to vector<1x8xf32>
    %9 = arith.select %6, %7, %8 : vector<1x8xi1>, vector<1x8xf32>
    %10 = vector.shape_cast %9 : vector<1x8xf32> to vector<1x1x8xf32>
    %c8_i32 = arith.constant 8 : i32
    %11 = arith.muli %arg1, %c8_i32 : i32
    %12 = tpu.assume_multiple %11, 8 : i32
    %c0_5 = arith.constant 0 : index
    %13 = arith.index_cast %12 : i32 to index
    %c0_6 = arith.constant 0 : index
    %14 = vector.load %arg2[%c0_5, %13, %c0_6] : memref<1x8x32xbf16, #tpu.memory_space<vmem>>, vector<1x8x32xbf16>
    %15 = vector.shape_cast %14 : vector<1x8x32xbf16> to vector<8x32xbf16>
    %16 = arith.extf %15 : vector<8x32xbf16> to vector<8x32xf32>
    %c0_7 = arith.constant 0 : index
    %c0_8 = arith.constant 0 : index
    %17 = vector.load %arg4[%c0_7, %c0_8] : memref<1x32xf32, #tpu.memory_space<vmem>>, vector<1x32xf32>
    %c0_9 = arith.constant 0 : index
    %c0_10 = arith.constant 0 : index
    %18 = vector.load %arg5[%c0_9, %c0_10] : memref<1x32xf32, #tpu.memory_space<vmem>>, vector<1x32xf32>
    %cst_11 = arith.constant dense<0.000000e+00> : vector<8xf32>
    %19 = vector.multi_reduction <add>, %16, %cst_11 [1] : vector<8x32xf32> to vector<8xf32>
    %20 = vector.shape_cast %19 : vector<8xf32> to vector<8x1xf32>
    %cst_12 = arith.constant 3.200000e+01 : f32
    %21 = vector.broadcast %cst_12 : f32 to vector<8x1xf32>
    %22 = arith.divf %20, %21 : vector<8x1xf32>
    %23 = vector.broadcast %22 : vector<8x1xf32> to vector<8x32xf32>
    %24 = arith.subf %16, %23 : vector<8x32xf32>
    %25 = arith.mulf %24, %24 : vector<8x32xf32>
    %cst_13 = arith.constant dense<0.000000e+00> : vector<8xf32>
    %26 = vector.multi_reduction <add>, %25, %cst_13 [1] : vector<8x32xf32> to vector<8xf32>
    %27 = vector.shape_cast %26 : vector<8xf32> to vector<8x1xf32>
    %cst_14 = arith.constant 3.200000e+01 : f32
    %28 = vector.broadcast %cst_14 : f32 to vector<8x1xf32>
    %29 = arith.divf %27, %28 : vector<8x1xf32>
    %30 = vector.broadcast %22 : vector<8x1xf32> to vector<8x32xf32>
    %31 = arith.subf %16, %30 : vector<8x32xf32>
    %cst_15 = arith.constant 9.99999997E-7 : f32
    %32 = vector.broadcast %cst_15 : f32 to vector<8x1xf32>
    %33 = arith.addf %29, %32 : vector<8x1xf32>
    %34 = math.rsqrt %33 : vector<8x1xf32>
    %35 = vector.broadcast %34 : vector<8x1xf32> to vector<8x32xf32>
    %36 = arith.mulf %31, %35 : vector<8x32xf32>
    %37 = vector.broadcast %17 : vector<1x32xf32> to vector<8x32xf32>
    %38 = arith.mulf %36, %37 : vector<8x32xf32>
    %39 = vector.broadcast %18 : vector<1x32xf32> to vector<8x32xf32>
    %40 = arith.addf %38, %39 : vector<8x32xf32>
    %41 = arith.truncf %40 : vector<8x32xf32> to vector<8x32xbf16>
    %c0_16 = arith.constant 0 : index
    %c0_17 = arith.constant 0 : index
    %42 = vector.load %arg6[%c0_16, %c0_17] : memref<32x32xbf16, #tpu.memory_space<vmem>>, vector<32x32xbf16>
    %cst_18 = arith.constant dense<0.000000e+00> : vector<8x32xf32>
    %43 = tpu.matmul %41, %42, %cst_18 {dimension_numbers = #tpu.dot_dimension_numbers<[1], [0], [0], [1], [0, 0, 1, 1], [], []>} : vector<8x32xbf16>, vector<32x32xbf16>, vector<8x32xf32> -> vector<8x32xf32>
    %c0_19 = arith.constant 0 : index
    %c0_20 = arith.constant 0 : index
    %44 = vector.load %arg7[%c0_19, %c0_20] : memref<1x32xf32, #tpu.memory_space<vmem>>, vector<1x32xf32>
    %45 = vector.broadcast %44 : vector<1x32xf32> to vector<8x32xf32>
    %46 = arith.addf %43, %45 : vector<8x32xf32>
    %cst_21 = arith.constant 0.353553385 : f32
    %47 = vector.broadcast %cst_21 : f32 to vector<8x32xf32>
    %48 = arith.mulf %46, %47 : vector<8x32xf32>
    %49 = vector.extract_strided_slice %48 {offsets = [0, 0], sizes = [8, 8], strides = [1, 1]} : vector<8x32xf32> to vector<8x8xf32>
    %50 = vector.extract_strided_slice %48 {offsets = [0, 8], sizes = [8, 8], strides = [1, 1]} : vector<8x32xf32> to vector<8x8xf32>
    %51 = vector.extract_strided_slice %48 {offsets = [0, 16], sizes = [8, 8], strides = [1, 1]} : vector<8x32xf32> to vector<8x8xf32>
    %52 = vector.extract_strided_slice %48 {offsets = [0, 24], sizes = [8, 8], strides = [1, 1]} : vector<8x32xf32> to vector<8x8xf32>
    %53 = vector.shape_cast %49 : vector<8x8xf32> to vector<1x8x8xf32>
    %54 = vector.shape_cast %50 : vector<8x8xf32> to vector<1x8x8xf32>
    %55 = vector.shape_cast %51 : vector<8x8xf32> to vector<1x8x8xf32>
    %56 = vector.shape_cast %52 : vector<8x8xf32> to vector<1x8x8xf32>
    %57 = tpu.concatenate %53, %54, %55, %56 in 0 : vector<1x8x8xf32>, vector<1x8x8xf32>, vector<1x8x8xf32>, vector<1x8x8xf32> -> vector<4x8x8xf32>
    %58 = arith.truncf %57 : vector<4x8x8xf32> to vector<4x8x8xbf16>
    %c0_22 = arith.constant 0 : index
    %c0_23 = arith.constant 0 : index
    %c0_24 = arith.constant 0 : index
    %59 = vector.load %arg21[%c0_22, %c0_23, %c0_24] : memref<4x8x8xbf16, #tpu.memory_space<vmem>>, vector<4x8x8xbf16>
    "tpu.trace_start"() <{level = 10 : i32, message = "hqd,hds->hqs"}> : () -> ()
    %cst_25 = arith.constant dense<0.000000e+00> : vector<4x8x8xf32>
    %60 = tpu.matmul %58, %59, %cst_25 {dimension_numbers = #tpu.dot_dimension_numbers<[2], [1], [1], [2], [0, 0, 0, 1, 1, 2], [0], [0]>} : vector<4x8x8xbf16>, vector<4x8x8xbf16>, vector<4x8x8xf32> -> vector<4x8x8xf32>
    "tpu.trace_stop"() : () -> ()
    %61 = vector.broadcast %10 : vector<1x1x8xf32> to vector<4x8x8xf32>
    %62 = arith.addf %60, %61 : vector<4x8x8xf32>
    %cst_26 = arith.constant dense<0xFF800000> : vector<4x8xf32>
    %63 = vector.multi_reduction <maximumf>, %62, %cst_26 [2] : vector<4x8x8xf32> to vector<4x8xf32>
    %64 = vector.shape_cast %63 : vector<4x8xf32> to vector<4x8x1xf32>
    %65 = vector.broadcast %64 : vector<4x8x1xf32> to vector<4x8x8xf32>
    %66 = arith.subf %62, %65 : vector<4x8x8xf32>
    %67 = math.exp %66 : vector<4x8x8xf32>
    %cst_27 = arith.constant dense<0.000000e+00> : vector<4x8xf32>
    %68 = vector.multi_reduction <add>, %67, %cst_27 [2] : vector<4x8x8xf32> to vector<4x8xf32>
    %69 = vector.shape_cast %68 : vector<4x8xf32> to vector<4x8x1xf32>
    %70 = arith.truncf %67 : vector<4x8x8xf32> to vector<4x8x8xbf16>
    %c0_28 = arith.constant 0 : index
    %c0_29 = arith.constant 0 : index
    %c0_30 = arith.constant 0 : index
    %71 = vector.load %arg22[%c0_28, %c0_29, %c0_30] : memref<4x8x8xbf16, #tpu.memory_space<vmem>>, vector<4x8x8xbf16>
    "tpu.trace_start"() <{level = 10 : i32, message = "hqs,hsd->hqd"}> : () -> ()
    %cst_31 = arith.constant dense<0.000000e+00> : vector<4x8x8xf32>
    %72 = tpu.matmul %70, %71, %cst_31 {dimension_numbers = #tpu.dot_dimension_numbers<[2], [1], [1], [2], [0, 0, 0, 1, 1, 2], [0], [0]>} : vector<4x8x8xbf16>, vector<4x8x8xbf16>, vector<4x8x8xf32> -> vector<4x8x8xf32>
    "tpu.trace_stop"() : () -> ()
    %73 = tpu.reciprocal %69 {approx = true} : vector<4x8x1xf32> -> vector<4x8x1xf32>
    %74 = vector.broadcast %73 : vector<4x8x1xf32> to vector<4x8x8xf32>
    %75 = arith.mulf %72, %74 : vector<4x8x8xf32>
    %76 = vector.extract_strided_slice %75 {offsets = [0, 0, 0], sizes = [1, 8, 8], strides = [1, 1, 1]} : vector<4x8x8xf32> to vector<1x8x8xf32>
    %77 = vector.shape_cast %76 : vector<1x8x8xf32> to vector<8x8xf32>
    %78 = vector.extract_strided_slice %75 {offsets = [1, 0, 0], sizes = [1, 8, 8], strides = [1, 1, 1]} : vector<4x8x8xf32> to vector<1x8x8xf32>
    %79 = vector.shape_cast %78 : vector<1x8x8xf32> to vector<8x8xf32>
    %80 = vector.extract_strided_slice %75 {offsets = [2, 0, 0], sizes = [1, 8, 8], strides = [1, 1, 1]} : vector<4x8x8xf32> to vector<1x8x8xf32>
    %81 = vector.shape_cast %80 : vector<1x8x8xf32> to vector<8x8xf32>
    %82 = vector.extract_strided_slice %75 {offsets = [3, 0, 0], sizes = [1, 8, 8], strides = [1, 1, 1]} : vector<4x8x8xf32> to vector<1x8x8xf32>
    %83 = vector.shape_cast %82 : vector<1x8x8xf32> to vector<8x8xf32>
    %84 = tpu.concatenate %77, %79, %81, %83 in 1 : vector<8x8xf32>, vector<8x8xf32>, vector<8x8xf32>, vector<8x8xf32> -> vector<8x32xf32>
    %85 = arith.truncf %84 : vector<8x32xf32> to vector<8x32xbf16>
    %c0_32 = arith.constant 0 : index
    %c0_33 = arith.constant 0 : index
    %86 = vector.load %arg12[%c0_32, %c0_33] : memref<32x32xbf16, #tpu.memory_space<vmem>>, vector<32x32xbf16>
    %cst_34 = arith.constant dense<0.000000e+00> : vector<8x32xf32>
    %87 = tpu.matmul %85, %86, %cst_34 {dimension_numbers = #tpu.dot_dimension_numbers<[1], [0], [0], [1], [0, 0, 1, 1], [], []>} : vector<8x32xbf16>, vector<32x32xbf16>, vector<8x32xf32> -> vector<8x32xf32>
    %c0_35 = arith.constant 0 : index
    %c0_36 = arith.constant 0 : index
    %88 = vector.load %arg13[%c0_35, %c0_36] : memref<1x32xf32, #tpu.memory_space<vmem>>, vector<1x32xf32>
    %89 = vector.broadcast %88 : vector<1x32xf32> to vector<8x32xf32>
    %90 = arith.addf %87, %89 : vector<8x32xf32>
    %91 = arith.addf %90, %16 : vector<8x32xf32>
    %c0_37 = arith.constant 0 : index
    %c0_38 = arith.constant 0 : index
    %92 = vector.load %arg14[%c0_37, %c0_38] : memref<1x32xf32, #tpu.memory_space<vmem>>, vector<1x32xf32>
    %c0_39 = arith.constant 0 : index
    %c0_40 = arith.constant 0 : index
    %93 = vector.load %arg15[%c0_39, %c0_40] : memref<1x32xf32, #tpu.memory_space<vmem>>, vector<1x32xf32>
    %cst_41 = arith.constant dense<0.000000e+00> : vector<8xf32>
    %94 = vector.multi_reduction <add>, %91, %cst_41 [1] : vector<8x32xf32> to vector<8xf32>
    %95 = vector.shape_cast %94 : vector<8xf32> to vector<8x1xf32>
    %cst_42 = arith.constant 3.200000e+01 : f32
    %96 = vector.broadcast %cst_42 : f32 to vector<8x1xf32>
    %97 = arith.divf %95, %96 : vector<8x1xf32>
    %98 = vector.broadcast %97 : vector<8x1xf32> to vector<8x32xf32>
    %99 = arith.subf %91, %98 : vector<8x32xf32>
    %100 = arith.mulf %99, %99 : vector<8x32xf32>
    %cst_43 = arith.constant dense<0.000000e+00> : vector<8xf32>
    %101 = vector.multi_reduction <add>, %100, %cst_43 [1] : vector<8x32xf32> to vector<8xf32>
    %102 = vector.shape_cast %101 : vector<8xf32> to vector<8x1xf32>
    %cst_44 = arith.constant 3.200000e+01 : f32
    %103 = vector.broadcast %cst_44 : f32 to vector<8x1xf32>
    %104 = arith.divf %102, %103 : vector<8x1xf32>
    %105 = vector.broadcast %97 : vector<8x1xf32> to vector<8x32xf32>
    %106 = arith.subf %91, %105 : vector<8x32xf32>
    %cst_45 = arith.constant 9.99999997E-7 : f32
    %107 = vector.broadcast %cst_45 : f32 to vector<8x1xf32>
    %108 = arith.addf %104, %107 : vector<8x1xf32>
    %109 = math.rsqrt %108 : vector<8x1xf32>
    %110 = vector.broadcast %109 : vector<8x1xf32> to vector<8x32xf32>
    %111 = arith.mulf %106, %110 : vector<8x32xf32>
    %112 = vector.broadcast %92 : vector<1x32xf32> to vector<8x32xf32>
    %113 = arith.mulf %111, %112 : vector<8x32xf32>
    %114 = vector.broadcast %93 : vector<1x32xf32> to vector<8x32xf32>
    %115 = arith.addf %113, %114 : vector<8x32xf32>
    %116 = arith.truncf %115 : vector<8x32xf32> to vector<8x32xbf16>
    %c0_46 = arith.constant 0 : index
    %c0_47 = arith.constant 0 : index
    %117 = vector.load %arg16[%c0_46, %c0_47] : memref<32x64xbf16, #tpu.memory_space<vmem>>, vector<32x64xbf16>
    %cst_48 = arith.constant dense<0.000000e+00> : vector<8x64xf32>
    %118 = tpu.matmul %116, %117, %cst_48 {dimension_numbers = #tpu.dot_dimension_numbers<[1], [0], [0], [1], [0, 0, 1, 1], [], []>} : vector<8x32xbf16>, vector<32x64xbf16>, vector<8x64xf32> -> vector<8x64xf32>
    %c0_49 = arith.constant 0 : index
    %c0_50 = arith.constant 0 : index
    %119 = vector.load %arg17[%c0_49, %c0_50] : memref<1x64xf32, #tpu.memory_space<vmem>>, vector<1x64xf32>
    %120 = vector.broadcast %119 : vector<1x64xf32> to vector<8x64xf32>
    %121 = arith.addf %118, %120 : vector<8x64xf32>
    %cst_51 = arith.constant 5.000000e-01 : f32
    %122 = vector.broadcast %cst_51 : f32 to vector<8x64xf32>
    %123 = arith.mulf %122, %121 : vector<8x64xf32>
    %cst_52 = arith.constant 4.471500e-02 : f32
    %124 = vector.broadcast %cst_52 : f32 to vector<8x64xf32>
    %125 = arith.mulf %124, %121 : vector<8x64xf32>
    %126 = arith.mulf %125, %121 : vector<8x64xf32>
    %127 = arith.mulf %126, %121 : vector<8x64xf32>
    %128 = arith.addf %121, %127 : vector<8x64xf32>
    %cst_53 = arith.constant 0.797884583 : f32
    %129 = vector.broadcast %cst_53 : f32 to vector<8x64xf32>
    %130 = arith.mulf %129, %128 : vector<8x64xf32>
    %131 = math.tanh %130 : vector<8x64xf32>
    %cst_54 = arith.constant 1.000000e+00 : f32
    %132 = vector.broadcast %cst_54 : f32 to vector<8x64xf32>
    %133 = arith.addf %132, %131 : vector<8x64xf32>
    %134 = arith.mulf %123, %133 : vector<8x64xf32>
    %135 = arith.truncf %134 : vector<8x64xf32> to vector<8x64xbf16>
    %c0_55 = arith.constant 0 : index
    %c0_56 = arith.constant 0 : index
    %136 = vector.load %arg18[%c0_55, %c0_56] : memref<64x32xbf16, #tpu.memory_space<vmem>>, vector<64x32xbf16>
    %cst_57 = arith.constant dense<0.000000e+00> : vector<8x32xf32>
    %137 = tpu.matmul %135, %136, %cst_57 {dimension_numbers = #tpu.dot_dimension_numbers<[1], [0], [0], [1], [0, 0, 1, 1], [], []>} : vector<8x64xbf16>, vector<64x32xbf16>, vector<8x32xf32> -> vector<8x32xf32>
    %c0_58 = arith.constant 0 : index
    %c0_59 = arith.constant 0 : index
    %138 = vector.load %arg19[%c0_58, %c0_59] : memref<1x32xf32, #tpu.memory_space<vmem>>, vector<1x32xf32>
    %139 = vector.broadcast %138 : vector<1x32xf32> to vector<8x32xf32>
    %140 = arith.addf %137, %139 : vector<8x32xf32>
    %141 = arith.addf %140, %91 : vector<8x32xf32>
    %c0_60 = arith.constant 0 : index
    %c0_61 = arith.constant 0 : index
    %c0_62 = arith.constant 0 : index
    %142 = vector.load %arg20[%c0_60, %c0_61, %c0_62] : memref<1x8x32xf32, #tpu.memory_space<vmem>>, vector<1x8x32xf32>
    %143 = vector.shape_cast %142 : vector<1x8x32xf32> to vector<8x32xf32>
    %144 = vector.shape_cast %141 : vector<8x32xf32> to vector<1x8x32xf32>
    tpu.vector_store %arg20[%c0_60, %c0_61, %c0_62], %144 {strides = array<i32>} : memref<1x8x32xf32, #tpu.memory_space<vmem>>, vector<1x8x32xf32>,
    return
  }
  func.func @transform_0(%arg0: i32, %arg1: i32) -> (i32, i32, i32) {
    %c0_i32 = arith.constant 0 : i32
    %c0_i32_0 = arith.constant 0 : i32
    %c0_i32_1 = arith.constant 0 : i32
    return %arg0, %c0_i32, %c0_i32_0 : i32, i32, i32
  }
  func.func @transform_1(%arg0: i32, %arg1: i32) -> (i32, i32, i32) {
    %c0_i32 = arith.constant 0 : i32
    %c0_i32_0 = arith.constant 0 : i32
    %c0_i32_1 = arith.constant 0 : i32
    return %arg0, %c0_i32, %c0_i32_0 : i32, i32, i32
  }
  func.func @transform_2(%arg0: i32, %arg1: i32) -> (i32, i32) {
    %c0_i32 = arith.constant 0 : i32
    %c0_i32_0 = arith.constant 0 : i32
    %c0_i32_1 = arith.constant 0 : i32
    return %c0_i32, %c0_i32_0 : i32, i32
  }
  func.func @transform_3(%arg0: i32, %arg1: i32) -> (i32, i32) {
    %c0_i32 = arith.constant 0 : i32
    %c0_i32_0 = arith.constant 0 : i32
    %c0_i32_1 = arith.constant 0 : i32
    return %c0_i32, %c0_i32_0 : i32, i32
  }
  func.func @transform_4(%arg0: i32, %arg1: i32) -> (i32, i32) {
    %c0_i32 = arith.constant 0 : i32
    %c0_i32_0 = arith.constant 0 : i32
    %c0_i32_1 = arith.constant 0 : i32
    return %c0_i32, %c0_i32_0 : i32, i32
  }
  func.func @transform_5(%arg0: i32, %arg1: i32) -> (i32, i32) {
    %c0_i32 = arith.constant 0 : i32
    %c0_i32_0 = arith.constant 0 : i32
    %c0_i32_1 = arith.constant 0 : i32
    return %c0_i32, %c0_i32_0 : i32, i32
  }
  func.func @transform_6(%arg0: i32, %arg1: i32) -> (i32, i32) {
    %c0_i32 = arith.constant 0 : i32
    %c0_i32_0 = arith.constant 0 : i32
    %c0_i32_1 = arith.constant 0 : i32
    return %c0_i32, %c0_i32_0 : i32, i32
  }
  func.func @transform_7(%arg0: i32, %arg1: i32) -> (i32, i32) {
    %c0_i32 = arith.constant 0 : i32
    %c0_i32_0 = arith.constant 0 : i32
    %c0_i32_1 = arith.constant 0 : i32
    return %c0_i32, %c0_i32_0 : i32, i32
  }
  func.func @transform_8(%arg0: i32, %arg1: i32) -> (i32, i32) {
    %c0_i32 = arith.constant 0 : i32
    %c0_i32_0 = arith.constant 0 : i32
    %c0_i32_1 = arith.constant 0 : i32
    return %c0_i32, %c0_i32_0 : i32, i32
  }
  func.func @transform_9(%arg0: i32, %arg1: i32) -> (i32, i32) {
    %c0_i32 = arith.constant 0 : i32
    %c0_i32_0 = arith.constant 0 : i32
    %c0_i32_1 = arith.constant 0 : i32
    return %c0_i32, %c0_i32_0 : i32, i32
  }
  func.func @transform_10(%arg0: i32, %arg1: i32) -> (i32, i32) {
    %c0_i32 = arith.constant 0 : i32
    %c0_i32_0 = arith.constant 0 : i32
    %c0_i32_1 = arith.constant 0 : i32
    return %c0_i32, %c0_i32_0 : i32, i32
  }
  func.func @transform_11(%arg0: i32, %arg1: i32) -> (i32, i32) {
    %c0_i32 = arith.constant 0 : i32
    %c0_i32_0 = arith.constant 0 : i32
    %c0_i32_1 = arith.constant 0 : i32
    return %c0_i32, %c0_i32_0 : i32, i32
  }
  func.func @transform_12(%arg0: i32, %arg1: i32) -> (i32, i32) {
    %c0_i32 = arith.constant 0 : i32
    %c0_i32_0 = arith.constant 0 : i32
    %c0_i32_1 = arith.constant 0 : i32
    return %c0_i32, %c0_i32_0 : i32, i32
  }
  func.func @transform_13(%arg0: i32, %arg1: i32) -> (i32, i32) {
    %c0_i32 = arith.constant 0 : i32
    %c0_i32_0 = arith.constant 0 : i32
    %c0_i32_1 = arith.constant 0 : i32
    return %c0_i32, %c0_i32_0 : i32, i32
  }
  func.func @transform_14(%arg0: i32, %arg1: i32) -> (i32, i32) {
    %c0_i32 = arith.constant 0 : i32
    %c0_i32_0 = arith.constant 0 : i32
    %c0_i32_1 = arith.constant 0 : i32
    return %c0_i32, %c0_i32_0 : i32, i32
  }
  func.func @transform_15(%arg0: i32, %arg1: i32) -> (i32, i32) {
    %c0_i32 = arith.constant 0 : i32
    %c0_i32_0 = arith.constant 0 : i32
    %c0_i32_1 = arith.constant 0 : i32
    return %c0_i32, %c0_i32_0 : i32, i32
  }
  func.func @transform_16(%arg0: i32, %arg1: i32) -> (i32, i32) {
    %c0_i32 = arith.constant 0 : i32
    %c0_i32_0 = arith.constant 0 : i32
    %c0_i32_1 = arith.constant 0 : i32
    return %c0_i32, %c0_i32_0 : i32, i32
  }
  func.func @transform_17(%arg0: i32, %arg1: i32) -> (i32, i32) {
    %c0_i32 = arith.constant 0 : i32
    %c0_i32_0 = arith.constant 0 : i32
    %c0_i32_1 = arith.constant 0 : i32
    return %c0_i32, %c0_i32_0 : i32, i32
  }
  func.func @transform_18(%arg0: i32, %arg1: i32) -> (i32, i32, i32) {
    %c0_i32 = arith.constant 0 : i32
    %c0_i32_0 = arith.constant 0 : i32
    return %arg0, %arg1, %c0_i32 : i32, i32, i32
  }
}

</mosaic_0001>

<llo_original>
// kernel: tpu_custom_call.1
$region0: #{tpu_custom_call.1}
  #allocation0 [shape = 'u32[]', space=smem, size = 0x4, offset = 0x4, fixed_abs, tag = 'smem constant byte address 0x4 - core index']
  #allocation1 [shape = 'u32[144,128]{1,0:T(1,128)}', space=vmem, size = 0x12000, scoped, tag = 'internal scratch']
  #allocation2 [shape = 'bf16[4,8,8]{2,1,0:T(8,128)(2,1)}', space=vmem, size = 0x2000, scoped, tag = 'scratch operand']
  #allocation3 [shape = 'bf16[4,8,8]{2,1,0:T(8,128)(2,1)}', space=vmem, size = 0x2000, scoped, tag = 'scratch operand']
  %s0 = inlined_call_operand.hbm [shape: bf16[2,8,32], index: 0, kind: input, shape index: {}]
  %s1 = inlined_call_operand.hbm [shape: f32[2,1,8], index: 1, kind: input, shape index: {}]
  %s2 = inlined_call_operand.hbm [shape: f32[1,32], index: 2, kind: input, shape index: {}]
  %s3 = inlined_call_operand.hbm [shape: f32[1,32], index: 3, kind: input, shape index: {}]
  %s4 = inlined_call_operand.vmem [shape: bf16[32,32], index: 4, kind: input, shape index: {}]
  %s5 = inlined_call_operand.hbm [shape: f32[1,32], index: 5, kind: input, shape index: {}]
  %s6 = inlined_call_operand.vmem [shape: bf16[32,32], index: 6, kind: input, shape index: {}]
  %s7 = inlined_call_operand.hbm [shape: f32[1,32], index: 7, kind: input, shape index: {}]
  %s8 = inlined_call_operand.vmem [shape: bf16[32,32], index: 8, kind: input, shape index: {}]
  %s9 = inlined_call_operand.hbm [shape: f32[1,32], index: 9, kind: input, shape index: {}]
  %s10 = inlined_call_operand.vmem [shape: bf16[32,32], index: 10, kind: input, shape index: {}]
  %s11 = inlined_call_operand.vmem [shape: f32[1,32], index: 11, kind: input, shape index: {}]
  %s12 = inlined_call_operand.vmem [shape: f32[1,32], index: 12, kind: input, shape index: {}]
  %s13 = inlined_call_operand.vmem [shape: f32[1,32], index: 13, kind: input, shape index: {}]
  %s14 = inlined_call_operand.hbm [shape: bf16[32,64], index: 14, kind: input, shape index: {}]
  %s15 = inlined_call_operand.vmem [shape: f32[1,64], index: 15, kind: input, shape index: {}]
  %s16 = inlined_call_operand.vmem [shape: bf16[64,32], index: 16, kind: input, shape index: {}]
  %s17 = inlined_call_operand.vmem [shape: f32[1,32], index: 17, kind: input, shape index: {}]
  %s18 = inlined_call_operand.hbm [shape: f32[2,8,32], index: 18, kind: output, shape index: {}]
  %s19 = sld [smem:[#allocation0]]
  $region141: #{tpu_custom_call.1} parent=0
    _
  %s21 = ssub.s32 1, %s19
  %s22 = scalar_select 0, %s21, %s19
  $region1: #{tpu_custom_call.1} parent=0
    #allocation4 [shape = 'u8[4096]{0}', space=vmem, size = 0x1000, scoped, tag = 'input window, operand 0']
    #allocation5 [shape = 's32[2]{0}', space=sflag, size = 0x8, scoped, tag = 'scoped memory for tpu_custom_call.1']
    #allocation6 [shape = 's32[2]{0}', space=sflag, size = 0x8, scoped, tag = 'scoped memory for tpu_custom_call.1']
    #allocation7 [shape = 'u8[1024]{0}', space=vmem, size = 0x400, scoped, tag = 'input window, operand 1']
    #allocation8 [shape = 's32[2]{0}', space=sflag, size = 0x8, scoped, tag = 'scoped memory for tpu_custom_call.1']
    #allocation9 [shape = 'u8[512]{0}', space=vmem, size = 0x400, scoped, tag = 'input window, operand 2, single buffered']
    #allocation10 [shape = 'u8[512]{0}', space=vmem, size = 0x400, scoped, tag = 'input window, operand 3, single buffered']
    #allocation11 [shape = 's32[1]{0}', space=sflag, size = 0x4, scoped, tag = 'scoped memory for tpu_custom_call.1']
    #allocation12 [shape = 'u8[512]{0}', space=vmem, size = 0x400, scoped, tag = 'input window, operand 5, single buffered']
    #allocation13 [shape = 'u8[512]{0}', space=vmem, size = 0x400, scoped, tag = 'input window, operand 7, single buffered']
    #allocation14 [shape = 's32[1]{0}', space=sflag, size = 0x4, scoped, tag = 'scoped memory for tpu_custom_call.1']
    #allocation15 [shape = 'u8[512]{0}', space=vmem, size = 0x400, scoped, tag = 'input window, operand 9, single buffered']
    #allocation16 [shape = 'u8[8192]{0}', space=vmem, size = 0x2000, scoped, tag = 'input window, operand 14, single buffered']
    #allocation17 [shape = 's32[1]{0}', space=sflag, size = 0x4, scoped, tag = 'scoped memory for tpu_custom_call.1']
    #allocation18 [shape = 'u8[8192]{0}', space=vmem, size = 0x2000, scoped, tag = 'output window, operand 0']
    %23 = vsyncpa [#allocation5], 0
    %s24 = scalar_lea.sflag [#allocation5], 1
    %25 = vsyncpa %s24, 0
    %26 = vsyncpa [#allocation8], 0
    %s27 = scalar_lea.sflag [#allocation8], 1
    %28 = vsyncpa %s27, 0
    %29 = vsyncpa [#allocation11], 0
    %30 = vsyncpa [#allocation14], 0
    %31 = vsyncpa [#allocation17], 0
    %32 = vsyncpa [#allocation6], 0
    %s33 = scalar_lea.sflag [#allocation6], 1
    %34 = vsyncpa %s33, 0
    loop: start=0, step=1, limit=4
    $region2: #{tpu_custom_call.1} parent=1 // loop_pre_header
      _
    $region3: #{tpu_custom_call.1} parent=1 // loop_header
      %s36 = sphi 0, %s40
      %p37 = scmp.ge.s32.totalorder %s36, 4
      %s43 = sphi 0, %s55
      %s44 = sphi 0, %s51
      %s45 = sphi 0, %s43
      %s46 = sphi 0, %s44
      %s47 = sphi 0, %s45
      %s48 = sphi 0, %s46
      %s58 = sphi 0, %s60
      %s61 = sphi 0, %s58
      %s62 = sphi 0, %s61
      %s78 = sphi 0, %s62
      %s84 = sphi 0, %s86
      %s87 = sphi 0, %s84
      %s88 = sphi 0, %s87
      %s104 = sphi 0, %s88
      %s108 = sphi 0, %s108
      %s110 = sphi 0, %s108
      %s111 = sphi 0, %s110
      %s125 = sphi 0, %s111
      %s129 = sphi 0, %s129
      %s131 = sphi 0, %s129
      %s132 = sphi 0, %s131
      %s146 = sphi 0, %s132
      %s150 = sphi 0, %s150
      %s152 = sphi 0, %s150
      %s153 = sphi 0, %s152
      %s167 = sphi 0, %s153
      %s171 = sphi 0, %s171
      %s173 = sphi 0, %s171
      %s174 = sphi 0, %s173
      %s188 = sphi 0, %s174
      %s192 = sphi 0, %s192
      %s194 = sphi 0, %s192
      %s195 = sphi 0, %s194
      %s209 = sphi 0, %s195
      %s213 = sphi 0, %s213
      %s215 = sphi 0, %s213
      %s216 = sphi 0, %s215
      %s230 = sphi 0, %s216
      %s234 = sphi 0, %s234
      %s236 = sphi 0, %s234
      %s237 = sphi 0, %s236
      %s251 = sphi 0, %s237
      %s255 = sphi 0, %s255
      %s257 = sphi 0, %s255
      %s258 = sphi 0, %s257
      %s272 = sphi 0, %s258
      %s276 = sphi 0, %s276
      %s278 = sphi 0, %s276
      %s279 = sphi 0, %s278
      %s293 = sphi 0, %s279
      %s297 = sphi 0, %s297
      %s299 = sphi 0, %s297
      %s300 = sphi 0, %s299
      %s314 = sphi 0, %s300
      %s318 = sphi 0, %s318
      %s320 = sphi 0, %s318
      %s321 = sphi 0, %s320
      %s335 = sphi 0, %s321
      %s339 = sphi 0, %s339
      %s341 = sphi 0, %s339
      %s342 = sphi 0, %s341
      %s356 = sphi 0, %s342
      %s360 = sphi 0, %s360
      %s362 = sphi 0, %s360
      %s363 = sphi 0, %s362
      %s377 = sphi 0, %s363
      %s381 = sphi 0, %s381
      %s383 = sphi 0, %s381
      %s384 = sphi 0, %s383
      %s398 = sphi 0, %s384
      %s402 = sphi 0, %s402
      %s404 = sphi 0, %s402
      %s405 = sphi 0, %s404
      %s419 = sphi 0, %s405
      %s423 = sphi 0, %s423
      %s425 = sphi 0, %s423
      %s426 = sphi 0, %s425
      %s440 = sphi 0, %s426
      %s448 = sphi 0, %s450
      %s451 = sphi 0, %s448
      %s452 = sphi 0, %s451
      %s468 = sphi 0, %s452
    $region4: #{tpu_custom_call.1} parent=1 // loop_header_branch
      %39 = sbr.rel (%p37) target = $region8
    $region5: #{tpu_custom_call.1} parent=1 // loop_body
      %s41 = ssub.s32 %s36, 1
      %s42 = ssub.s32 %s36, 2
      %s49 = sadd.s32 1, %s44
      %p50 = scmp.ge.s32.totalorder %s49, 1
      %s51 = scalar_select %p50, 0, %s49
      %s52 = sadd.s32 1, %s43
      %s53 = scalar_select %p50, %s52, %s43
      %p54 = scmp.ge.s32.totalorder %s53, 2
      %s55 = scalar_select %p54, 0, %s53
      %s56 = ssub.s32 %s43, %s55
      %p57 = scmp.eq.s32.totalorder %s56, 0
      %s59 = sadd.s32 %s58, 1
      %s60 = scalar_select %p57, %s58, %s59
      %p63 = pneg %p57
      %p64 = scmp.eq.s32.totalorder %s36, 1
      %p65 = por %p63, %p64
      %p66 = scmp.ne.s32.totalorder %s58, %s61
      %p67 = scmp.eq.s32.totalorder %s36, 0
      %p68 = por %p66, %p67
      %p69 = scmp.ne.s32.totalorder %s58, %s61
      %p70 = scmp.eq.s32.totalorder %s41, 1
      %p71 = por %p69, %p70
      %p72 = scmp.ne.s32.totalorder %s61, %s62
      %p73 = scmp.eq.s32.totalorder %s41, 0
      %p74 = por %p72, %p73
      %p75 = scmp.ne.s32.totalorder %s61, %s62
      %p76 = scmp.eq.s32.totalorder %s42, 1
      %p77 = por %p75, %p76
      %p79 = scmp.ne.s32.totalorder %s62, %s78
      %p80 = scmp.eq.s32.totalorder %s42, 0
      %p81 = por %p79, %p80
      %s82 = ssub.s32 %s43, %s55
      %p83 = scmp.eq.s32.totalorder %s82, 0
      %s85 = sadd.s32 %s84, 1
      %s86 = scalar_select %p83, %s84, %s85
      %p89 = pneg %p83
      %p90 = scmp.eq.s32.totalorder %s36, 1
      %p91 = por %p89, %p90
      %p92 = scmp.ne.s32.totalorder %s84, %s87
      %p93 = scmp.eq.s32.totalorder %s36, 0
      %p94 = por %p92, %p93
      %p95 = scmp.ne.s32.totalorder %s84, %s87
      %p96 = scmp.eq.s32.totalorder %s41, 1
      %p97 = por %p95, %p96
      %p98 = scmp.ne.s32.totalorder %s87, %s88
      %p99 = scmp.eq.s32.totalorder %s41, 0
      %p100 = por %p98, %p99
      %p101 = scmp.ne.s32.totalorder %s87, %s88
      %p102 = scmp.eq.s32.totalorder %s42, 1
      %p103 = por %p101, %p102
      %p105 = scmp.ne.s32.totalorder %s88, %s104
      %p106 = scmp.eq.s32.totalorder %s42, 0
      %p107 = por %p105, %p106
      %s109 = sadd.s32 %s108, 1
      %p112 = scmp.eq.s32.totalorder %s36, 1
      %p113 = scmp.ne.s32.totalorder %s108, %s110
      %p114 = scmp.eq.s32.totalorder %s36, 0
      %p115 = por %p113, %p114
      %p116 = scmp.ne.s32.totalorder %s108, %s110
      %p117 = scmp.eq.s32.totalorder %s41, 1
      %p118 = por %p116, %p117
      %p119 = scmp.ne.s32.totalorder %s110, %s111
      %p120 = scmp.eq.s32.totalorder %s41, 0
      %p121 = por %p119, %p120
      %p122 = scmp.ne.s32.totalorder %s110, %s111
      %p123 = scmp.eq.s32.totalorder %s42, 1
      %p124 = por %p122, %p123
      %p126 = scmp.ne.s32.totalorder %s111, %s125
      %p127 = scmp.eq.s32.totalorder %s42, 0
      %p128 = por %p126, %p127
      %s130 = sadd.s32 %s129, 1
      %p133 = scmp.eq.s32.totalorder %s36, 1
      %p134 = scmp.ne.s32.totalorder %s129, %s131
      %p135 = scmp.eq.s32.totalorder %s36, 0
      %p136 = por %p134, %p135
      %p137 = scmp.ne.s32.totalorder %s129, %s131
      %p138 = scmp.eq.s32.totalorder %s41, 1
      %p139 = por %p137, %p138
      %p140 = scmp.ne.s32.totalorder %s131, %s132
      %p141 = scmp.eq.s32.totalorder %s41, 0
      %p142 = por %p140, %p141
      %p143 = scmp.ne.s32.totalorder %s131, %s132
      %p144 = scmp.eq.s32.totalorder %s42, 1
      %p145 = por %p143, %p144
      %p147 = scmp.ne.s32.totalorder %s132, %s146
      %p148 = scmp.eq.s32.totalorder %s42, 0
      %p149 = por %p147, %p148
      %s151 = sadd.s32 %s150, 1
      %p154 = scmp.eq.s32.totalorder %s36, 1
      %p155 = scmp.ne.s32.totalorder %s150, %s152
      %p156 = scmp.eq.s32.totalorder %s36, 0
      %p157 = por %p155, %p156
      %p158 = scmp.ne.s32.totalorder %s150, %s152
      %p159 = scmp.eq.s32.totalorder %s41, 1
      %p160 = por %p158, %p159
      %p161 = scmp.ne.s32.totalorder %s152, %s153
      %p162 = scmp.eq.s32.totalorder %s41, 0
      %p163 = por %p161, %p162
      %p164 = scmp.ne.s32.totalorder %s152, %s153
      %p165 = scmp.eq.s32.totalorder %s42, 1
      %p166 = por %p164, %p165
      %p168 = scmp.ne.s32.totalorder %s153, %s167
      %p169 = scmp.eq.s32.totalorder %s42, 0
      %p170 = por %p168, %p169
      %s172 = sadd.s32 %s171, 1
      %p175 = scmp.eq.s32.totalorder %s36, 1
      %p176 = scmp.ne.s32.totalorder %s171, %s173
      %p177 = scmp.eq.s32.totalorder %s36, 0
      %p178 = por %p176, %p177
      %p179 = scmp.ne.s32.totalorder %s171, %s173
      %p180 = scmp.eq.s32.totalorder %s41, 1
      %p181 = por %p179, %p180
      %p182 = scmp.ne.s32.totalorder %s173, %s174
      %p183 = scmp.eq.s32.totalorder %s41, 0
      %p184 = por %p182, %p183
      %p185 = scmp.ne.s32.totalorder %s173, %s174
      %p186 = scmp.eq.s32.totalorder %s42, 1
      %p187 = por %p185, %p186
      %p189 = scmp.ne.s32.totalorder %s174, %s188
      %p190 = scmp.eq.s32.totalorder %s42, 0
      %p191 = por %p189, %p190
      %s193 = sadd.s32 %s192, 1
      %p196 = scmp.eq.s32.totalorder %s36, 1
      %p197 = scmp.ne.s32.totalorder %s192, %s194
      %p198 = scmp.eq.s32.totalorder %s36, 0
      %p199 = por %p197, %p198
      %p200 = scmp.ne.s32.totalorder %s192, %s194
      %p201 = scmp.eq.s32.totalorder %s41, 1
      %p202 = por %p200, %p201
      %p203 = scmp.ne.s32.totalorder %s194, %s195
      %p204 = scmp.eq.s32.totalorder %s41, 0
      %p205 = por %p203, %p204
      %p206 = scmp.ne.s32.totalorder %s194, %s195
      %p207 = scmp.eq.s32.totalorder %s42, 1
      %p208 = por %p206, %p207
      %p210 = scmp.ne.s32.totalorder %s195, %s209
      %p211 = scmp.eq.s32.totalorder %s42, 0
      %p212 = por %p210, %p211
      %s214 = sadd.s32 %s213, 1
      %p217 = scmp.eq.s32.totalorder %s36, 1
      %p218 = scmp.ne.s32.totalorder %s213, %s215
      %p219 = scmp.eq.s32.totalorder %s36, 0
      %p220 = por %p218, %p219
      %p221 = scmp.ne.s32.totalorder %s213, %s215
      %p222 = scmp.eq.s32.totalorder %s41, 1
      %p223 = por %p221, %p222
      %p224 = scmp.ne.s32.totalorder %s215, %s216
      %p225 = scmp.eq.s32.totalorder %s41, 0
      %p226 = por %p224, %p225
      %p227 = scmp.ne.s32.totalorder %s215, %s216
      %p228 = scmp.eq.s32.totalorder %s42, 1
      %p229 = por %p227, %p228
      %p231 = scmp.ne.s32.totalorder %s216, %s230
      %p232 = scmp.eq.s32.totalorder %s42, 0
      %p233 = por %p231, %p232
      %s235 = sadd.s32 %s234, 1
      %p238 = scmp.eq.s32.totalorder %s36, 1
      %p239 = scmp.ne.s32.totalorder %s234, %s236
      %p240 = scmp.eq.s32.totalorder %s36, 0
      %p241 = por %p239, %p240
      %p242 = scmp.ne.s32.totalorder %s234, %s236
      %p243 = scmp.eq.s32.totalorder %s41, 1
      %p244 = por %p242, %p243
      %p245 = scmp.ne.s32.totalorder %s236, %s237
      %p246 = scmp.eq.s32.totalorder %s41, 0
      %p247 = por %p245, %p246
      %p248 = scmp.ne.s32.totalorder %s236, %s237
      %p249 = scmp.eq.s32.totalorder %s42, 1
      %p250 = por %p248, %p249
      %p252 = scmp.ne.s32.totalorder %s237, %s251
      %p253 = scmp.eq.s32.totalorder %s42, 0
      %p254 = por %p252, %p253
      %s256 = sadd.s32 %s255, 1
      %p259 = scmp.eq.s32.totalorder %s36, 1
      %p260 = scmp.ne.s32.totalorder %s255, %s257
      %p261 = scmp.eq.s32.totalorder %s36, 0
      %p262 = por %p260, %p261
      %p263 = scmp.ne.s32.totalorder %s255, %s257
      %p264 = scmp.eq.s32.totalorder %s41, 1
      %p265 = por %p263, %p264
      %p266 = scmp.ne.s32.totalorder %s257, %s258
      %p267 = scmp.eq.s32.totalorder %s41, 0
      %p268 = por %p266, %p267
      %p269 = scmp.ne.s32.totalorder %s257, %s258
      %p270 = scmp.eq.s32.totalorder %s42, 1
      %p271 = por %p269, %p270
      %p273 = scmp.ne.s32.totalorder %s258, %s272
      %p274 = scmp.eq.s32.totalorder %s42, 0
      %p275 = por %p273, %p274
      %s277 = sadd.s32 %s276, 1
      %p280 = scmp.eq.s32.totalorder %s36, 1
      %p281 = scmp.ne.s32.totalorder %s276, %s278
      %p282 = scmp.eq.s32.totalorder %s36, 0
      %p283 = por %p281, %p282
      %p284 = scmp.ne.s32.totalorder %s276, %s278
      %p285 = scmp.eq.s32.totalorder %s41, 1
      %p286 = por %p284, %p285
      %p287 = scmp.ne.s32.totalorder %s278, %s279
      %p288 = scmp.eq.s32.totalorder %s41, 0
      %p289 = por %p287, %p288
      %p290 = scmp.ne.s32.totalorder %s278, %s279
      %p291 = scmp.eq.s32.totalorder %s42, 1
      %p292 = por %p290, %p291
      %p294 = scmp.ne.s32.totalorder %s279, %s293
      %p295 = scmp.eq.s32.totalorder %s42, 0
      %p296 = por %p294, %p295
      %s298 = sadd.s32 %s297, 1
      %p301 = scmp.eq.s32.totalorder %s36, 1
      %p302 = scmp.ne.s32.totalorder %s297, %s299
      %p303 = scmp.eq.s32.totalorder %s36, 0
      %p304 = por %p302, %p303
      %p305 = scmp.ne.s32.totalorder %s297, %s299
      %p306 = scmp.eq.s32.totalorder %s41, 1
      %p307 = por %p305, %p306
      %p308 = scmp.ne.s32.totalorder %s299, %s300
      %p309 = scmp.eq.s32.totalorder %s41, 0
      %p310 = por %p308, %p309
      %p311 = scmp.ne.s32.totalorder %s299, %s300
      %p312 = scmp.eq.s32.totalorder %s42, 1
      %p313 = por %p311, %p312
      %p315 = scmp.ne.s32.totalorder %s300, %s314
      %p316 = scmp.eq.s32.totalorder %s42, 0
      %p317 = por %p315, %p316
      %s319 = sadd.s32 %s318, 1
      %p322 = scmp.eq.s32.totalorder %s36, 1
      %p323 = scmp.ne.s32.totalorder %s318, %s320
      %p324 = scmp.eq.s32.totalorder %s36, 0
      %p325 = por %p323, %p324
      %p326 = scmp.ne.s32.totalorder %s318, %s320
      %p327 = scmp.eq.s32.totalorder %s41, 1
      %p328 = por %p326, %p327
      %p329 = scmp.ne.s32.totalorder %s320, %s321
      %p330 = scmp.eq.s32.totalorder %s41, 0
      %p331 = por %p329, %p330
      %p332 = scmp.ne.s32.totalorder %s320, %s321
      %p333 = scmp.eq.s32.totalorder %s42, 1
      %p334 = por %p332, %p333
      %p336 = scmp.ne.s32.totalorder %s321, %s335
      %p337 = scmp.eq.s32.totalorder %s42, 0
      %p338 = por %p336, %p337
      %s340 = sadd.s32 %s339, 1
      %p343 = scmp.eq.s32.totalorder %s36, 1
      %p344 = scmp.ne.s32.totalorder %s339, %s341
      %p345 = scmp.eq.s32.totalorder %s36, 0
      %p346 = por %p344, %p345
      %p347 = scmp.ne.s32.totalorder %s339, %s341
      %p348 = scmp.eq.s32.totalorder %s41, 1
      %p349 = por %p347, %p348
      %p350 = scmp.ne.s32.totalorder %s341, %s342
      %p351 = scmp.eq.s32.totalorder %s41, 0
      %p352 = por %p350, %p351
      %p353 = scmp.ne.s32.totalorder %s341, %s342
      %p354 = scmp.eq.s32.totalorder %s42, 1
      %p355 = por %p353, %p354
      %p357 = scmp.ne.s32.totalorder %s342, %s356
      %p358 = scmp.eq.s32.totalorder %s42, 0
      %p359 = por %p357, %p358
      %s361 = sadd.s32 %s360, 1
      %p364 = scmp.eq.s32.totalorder %s36, 1
      %p365 = scmp.ne.s32.totalorder %s360, %s362
      %p366 = scmp.eq.s32.totalorder %s36, 0
      %p367 = por %p365, %p366
      %p368 = scmp.ne.s32.totalorder %s360, %s362
      %p369 = scmp.eq.s32.totalorder %s41, 1
      %p370 = por %p368, %p369
      %p371 = scmp.ne.s32.totalorder %s362, %s363
      %p372 = scmp.eq.s32.totalorder %s41, 0
      %p373 = por %p371, %p372
      %p374 = scmp.ne.s32.totalorder %s362, %s363
      %p375 = scmp.eq.s32.totalorder %s42, 1
      %p376 = por %p374, %p375
      %p378 = scmp.ne.s32.totalorder %s363, %s377
      %p379 = scmp.eq.s32.totalorder %s42, 0
      %p380 = por %p378, %p379
      %s382 = sadd.s32 %s381, 1
      %p385 = scmp.eq.s32.totalorder %s36, 1
      %p386 = scmp.ne.s32.totalorder %s381, %s383
      %p387 = scmp.eq.s32.totalorder %s36, 0
      %p388 = por %p386, %p387
      %p389 = scmp.ne.s32.totalorder %s381, %s383
      %p390 = scmp.eq.s32.totalorder %s41, 1
      %p391 = por %p389, %p390
      %p392 = scmp.ne.s32.totalorder %s383, %s384
      %p393 = scmp.eq.s32.totalorder %s41, 0
      %p394 = por %p392, %p393
      %p395 = scmp.ne.s32.totalorder %s383, %s384
      %p396 = scmp.eq.s32.totalorder %s42, 1
      %p397 = por %p395, %p396
      %p399 = scmp.ne.s32.totalorder %s384, %s398
      %p400 = scmp.eq.s32.totalorder %s42, 0
      %p401 = por %p399, %p400
      %s403 = sadd.s32 %s402, 1
      %p406 = scmp.eq.s32.totalorder %s36, 1
      %p407 = scmp.ne.s32.totalorder %s402, %s404
      %p408 = scmp.eq.s32.totalorder %s36, 0
      %p409 = por %p407, %p408
      %p410 = scmp.ne.s32.totalorder %s402, %s404
      %p411 = scmp.eq.s32.totalorder %s41, 1
      %p412 = por %p410, %p411
      %p413 = scmp.ne.s32.totalorder %s404, %s405
      %p414 = scmp.eq.s32.totalorder %s41, 0
      %p415 = por %p413, %p414
      %p416 = scmp.ne.s32.totalorder %s404, %s405
      %p417 = scmp.eq.s32.totalorder %s42, 1
      %p418 = por %p416, %p417
      %p420 = scmp.ne.s32.totalorder %s405, %s419
      %p421 = scmp.eq.s32.totalorder %s42, 0
      %p422 = por %p420, %p421
      %s424 = sadd.s32 %s423, 1
      %p427 = scmp.eq.s32.totalorder %s36, 1
      %p428 = scmp.ne.s32.totalorder %s423, %s425
      %p429 = scmp.eq.s32.totalorder %s36, 0
      %p430 = por %p428, %p429
      %p431 = scmp.ne.s32.totalorder %s423, %s425
      %p432 = scmp.eq.s32.totalorder %s41, 1
      %p433 = por %p431, %p432
      %p434 = scmp.ne.s32.totalorder %s425, %s426
      %p435 = scmp.eq.s32.totalorder %s41, 0
      %p436 = por %p434, %p435
      %p437 = scmp.ne.s32.totalorder %s425, %s426
      %p438 = scmp.eq.s32.totalorder %s42, 1
      %p439 = por %p437, %p438
      %p441 = scmp.ne.s32.totalorder %s426, %s440
      %p442 = scmp.eq.s32.totalorder %s42, 0
      %p443 = por %p441, %p442
      %s444 = ssub.s32 %s43, %s55
      %s445 = ssub.s32 %s44, %s51
      %s446 = sor.u32 %s444, %s445
      %p447 = scmp.eq.s32.totalorder %s446, 0
      %s449 = sadd.s32 %s448, 1
      %s450 = scalar_select %p447, %s448, %s449
      %p453 = pneg %p447
      %p454 = scmp.eq.s32.totalorder %s36, 1
      %p455 = por %p453, %p454
      %p456 = scmp.ne.s32.totalorder %s448, %s451
      %p457 = scmp.eq.s32.totalorder %s36, 0
      %p458 = por %p456, %p457
      %p459 = scmp.ne.s32.totalorder %s448, %s451
      %p460 = scmp.eq.s32.totalorder %s41, 1
      %p461 = por %p459, %p460
      %p462 = scmp.ne.s32.totalorder %s451, %s452
      %p463 = scmp.eq.s32.totalorder %s41, 0
      %p464 = por %p462, %p463
      %p465 = scmp.ne.s32.totalorder %s451, %s452
      %p466 = scmp.eq.s32.totalorder %s42, 1
      %p467 = por %p465, %p466
      %p469 = scmp.ne.s32.totalorder %s452, %s468
      %p470 = scmp.eq.s32.totalorder %s42, 0
      %p471 = por %p469, %p470
      %p472 = scmp.le.s32.totalorder 1, %s36
      %p473 = scmp.lt.s32.totalorder %s36, 3
      %p474 = pnand %p472, %p473
      %p475 = pneg %p474
      // Predicated region
      $region9: #{tpu_custom_call.1} parent=5 // pred_check
        _
      $region10: #{tpu_custom_call.1} parent=5 // pred_check_branch
        %477 = sbr.rel (%p474) target = $region12
      $region11: #{tpu_custom_call.1} parent=5 // pred_region
        %s478 = ssub.s32 %s36, 1
        // Predicated region
        $region13: #{tpu_custom_call.1} parent=11 // pred_check
          %p479 = pneg %p121
        $region14: #{tpu_custom_call.1} parent=11 // pred_check_branch
          %481 = sbr.rel (%p479) target = $region16
        $region15: #{tpu_custom_call.1} parent=11 // pred_region
          %s483 = ssub.s32 16, 16
          %484 = vsyncadd [#allocation8], %s483
          %s486 = sshll.u32 [#allocation9], 4
          %s487 = int_to_ptr.vmem [resolvable:$true] %s486
          %489 = dma.hbm_to_vmem [thread:$0]  %s2, 16, %s487, [#allocation8]
        $region16: #{tpu_custom_call.1} parent=11 // pred_fallthru
          _
        // Predicated region
        $region17: #{tpu_custom_call.1} parent=11 // pred_check
          %p490 = pneg %p142
        $region18: #{tpu_custom_call.1} parent=11 // pred_check_branch
          %492 = sbr.rel (%p490) target = $region20
        $region19: #{tpu_custom_call.1} parent=11 // pred_region
          %s494 = ssub.s32 16, 16
          %495 = vsyncadd [#allocation11], %s494
          %s497 = sshll.u32 [#allocation10], 4
          %s498 = int_to_ptr.vmem [resolvable:$true] %s497
          %500 = dma.hbm_to_vmem [thread:$0]  %s3, 16, %s498, [#allocation11]
        $region20: #{tpu_custom_call.1} parent=11 // pred_fallthru
          _
        // Predicated region
        $region21: #{tpu_custom_call.1} parent=11 // pred_check
          %p501 = pneg %p163
        $region22: #{tpu_custom_call.1} parent=11 // pred_check_branch
          %503 = sbr.rel (%p501) target = $region24
        $region23: #{tpu_custom_call.1} parent=11 // pred_region
          _
        $region24: #{tpu_custom_call.1} parent=11 // pred_fallthru
          _
        // Predicated region
        $region25: #{tpu_custom_call.1} parent=11 // pred_check
          %p504 = pneg %p184
        $region26: #{tpu_custom_call.1} parent=11 // pred_check_branch
          %506 = sbr.rel (%p504) target = $region28
        $region27: #{tpu_custom_call.1} parent=11 // pred_region
          %s508 = ssub.s32 16, 16
          %509 = vsyncadd [#allocation11], %s508
          %s511 = sshll.u32 [#allocation12], 4
          %s512 = int_to_ptr.vmem [resolvable:$true] %s511
          %514 = dma.hbm_to_vmem [thread:$0]  %s5, 16, %s512, [#allocation11]
        $region28: #{tpu_custom_call.1} parent=11 // pred_fallthru
          _
        // Predicated region
        $region29: #{tpu_custom_call.1} parent=11 // pred_check
          %p515 = pneg %p205
        $region30: #{tpu_custom_call.1} parent=11 // pred_check_branch
          %517 = sbr.rel (%p515) target = $region32
        $region31: #{tpu_custom_call.1} parent=11 // pred_region
          _
        $region32: #{tpu_custom_call.1} parent=11 // pred_fallthru
          _
        // Predicated region
        $region33: #{tpu_custom_call.1} parent=11 // pred_check
          %p518 = pneg %p226
        $region34: #{tpu_custom_call.1} parent=11 // pred_check_branch
          %520 = sbr.rel (%p518) target = $region36
        $region35: #{tpu_custom_call.1} parent=11 // pred_region
          %s522 = ssub.s32 16, 16
          %523 = vsyncadd [#allocation14], %s522
          %s525 = sshll.u32 [#allocation13], 4
          %s526 = int_to_ptr.vmem [resolvable:$true] %s525
          %528 = dma.hbm_to_vmem [thread:$0]  %s7, 16, %s526, [#allocation14]
        $region36: #{tpu_custom_call.1} parent=11 // pred_fallthru
          _
        // Predicated region
        $region37: #{tpu_custom_call.1} parent=11 // pred_check
          %p529 = pneg %p247
        $region38: #{tpu_custom_call.1} parent=11 // pred_check_branch
          %531 = sbr.rel (%p529) target = $region40
        $region39: #{tpu_custom_call.1} parent=11 // pred_region
          _
        $region40: #{tpu_custom_call.1} parent=11 // pred_fallthru
          _
        // Predicated region
        $region41: #{tpu_custom_call.1} parent=11 // pred_check
          %p532 = pneg %p268
        $region42: #{tpu_custom_call.1} parent=11 // pred_check_branch
          %534 = sbr.rel (%p532) target = $region44
        $region43: #{tpu_custom_call.1} parent=11 // pred_region
          %s536 = ssub.s32 16, 16
          %537 = vsyncadd [#allocation14], %s536
          %s539 = sshll.u32 [#allocation15], 4
          %s540 = int_to_ptr.vmem [resolvable:$true] %s539
          %542 = dma.hbm_to_vmem [thread:$0]  %s9, 16, %s540, [#allocation14]
        $region44: #{tpu_custom_call.1} parent=11 // pred_fallthru
          _
        // Predicated region
        $region45: #{tpu_custom_call.1} parent=11 // pred_check
          %p543 = pneg %p289
        $region46: #{tpu_custom_call.1} parent=11 // pred_check_branch
          %545 = sbr.rel (%p543) target = $region48
        $region47: #{tpu_custom_call.1} parent=11 // pred_region
          _
        $region48: #{tpu_custom_call.1} parent=11 // pred_fallthru
          _
        // Predicated region
        $region49: #{tpu_custom_call.1} parent=11 // pred_check
          %p546 = pneg %p310
        $region50: #{tpu_custom_call.1} parent=11 // pred_check_branch
          %548 = sbr.rel (%p546) target = $region52
        $region51: #{tpu_custom_call.1} parent=11 // pred_region
          _
        $region52: #{tpu_custom_call.1} parent=11 // pred_fallthru
          _
        // Predicated region
        $region53: #{tpu_custom_call.1} parent=11 // pred_check
          %p549 = pneg %p331
        $region54: #{tpu_custom_call.1} parent=11 // pred_check_branch
          %551 = sbr.rel (%p549) target = $region56
        $region55: #{tpu_custom_call.1} parent=11 // pred_region
          _
        $region56: #{tpu_custom_call.1} parent=11 // pred_fallthru
          _
        // Predicated region
        $region57: #{tpu_custom_call.1} parent=11 // pred_check
          %p552 = pneg %p352
        $region58: #{tpu_custom_call.1} parent=11 // pred_check_branch
          %554 = sbr.rel (%p552) target = $region60
        $region59: #{tpu_custom_call.1} parent=11 // pred_region
          _
        $region60: #{tpu_custom_call.1} parent=11 // pred_fallthru
          _
        // Predicated region
        $region61: #{tpu_custom_call.1} parent=11 // pred_check
          %p555 = pneg %p373
        $region62: #{tpu_custom_call.1} parent=11 // pred_check_branch
          %557 = sbr.rel (%p555) target = $region64
        $region63: #{tpu_custom_call.1} parent=11 // pred_region
          %s559 = ssub.s32 256, 256
          %560 = vsyncadd [#allocation17], %s559
          %s561 = sshll.u32 [#allocation16], 4
          %s562 = int_to_ptr.vmem [resolvable:$true] %s561
          %567 = dma.hbm_to_vmem [thread:$0]  %s14, 256, %s562, [#allocation17], 64, 64, 4
        $region64: #{tpu_custom_call.1} parent=11 // pred_fallthru
          _
        // Predicated region
        $region65: #{tpu_custom_call.1} parent=11 // pred_check
          %p568 = pneg %p394
        $region66: #{tpu_custom_call.1} parent=11 // pred_check_branch
          %570 = sbr.rel (%p568) target = $region68
        $region67: #{tpu_custom_call.1} parent=11 // pred_region
          _
        $region68: #{tpu_custom_call.1} parent=11 // pred_fallthru
          _
        // Predicated region
        $region69: #{tpu_custom_call.1} parent=11 // pred_check
          %p571 = pneg %p415
        $region70: #{tpu_custom_call.1} parent=11 // pred_check_branch
          %573 = sbr.rel (%p571) target = $region72
        $region71: #{tpu_custom_call.1} parent=11 // pred_region
          _
        $region72: #{tpu_custom_call.1} parent=11 // pred_fallthru
          _
        // Predicated region
        $region73: #{tpu_custom_call.1} parent=11 // pred_check
          %p574 = pneg %p436
        $region74: #{tpu_custom_call.1} parent=11 // pred_check_branch
          %576 = sbr.rel (%p574) target = $region76
        $region75: #{tpu_custom_call.1} parent=11 // pred_region
          _
        $region76: #{tpu_custom_call.1} parent=11 // pred_fallthru
          _
      $region12: #{tpu_custom_call.1} parent=5 // pred_fallthru
        _
      %p577 = scmp.lt.s32.totalorder %s36, 2
      // Predicated region
      $region77: #{tpu_custom_call.1} parent=5 // pred_check
        %p578 = pneg %p577
      $region78: #{tpu_custom_call.1} parent=5 // pred_check_branch
        %580 = sbr.rel (%p578) target = $region80
      $region79: #{tpu_custom_call.1} parent=5 // pred_region
        // Predicated region
        $region81: #{tpu_custom_call.1} parent=79 // pred_check
          %p581 = pneg %p68
        $region82: #{tpu_custom_call.1} parent=79 // pred_check_branch
          %583 = sbr.rel (%p581) target = $region84
        $region83: #{tpu_custom_call.1} parent=79 // pred_region
          %s584 = sand.u32 %s58, 1
          %s585 = scalar_lea.sflag [#allocation5], %s584
          %s586 = sand.u32 %s58, 1
          %s587 = smul.addr %s586, 4
          %s588 = scalar_lea.vmem [#allocation4], %s587
          %s590 = ssub.s32 64, 64
          %591 = vsyncadd %s585, %s590
          %s592 = smul.addr %s43, 64
          %s593 = scalar_lea.hbm %s0, %s592
          %s595 = sshll.u32 %s588, 4
          %s596 = int_to_ptr.vmem [resolvable:$true] %s595
          %598 = dma.hbm_to_vmem [thread:$0]  %s593, 64, %s596, %s585
        $region84: #{tpu_custom_call.1} parent=79 // pred_fallthru
          _
        // Predicated region
        $region85: #{tpu_custom_call.1} parent=79 // pred_check
          %p599 = pneg %p94
        $region86: #{tpu_custom_call.1} parent=79 // pred_check_branch
          %601 = sbr.rel (%p599) target = $region88
        $region87: #{tpu_custom_call.1} parent=79 // pred_region
          %s602 = sand.u32 %s36, 1
          %s603 = scalar_lea.sflag [#allocation8], %s602
          %s604 = sand.u32 %s84, 1
          %s605 = scalar_lea.vmem [#allocation7], %s604
          %s607 = ssub.s32 16, 16
          %608 = vsyncadd %s603, %s607
          %s609 = smul.addr %s43, 16
          %s610 = scalar_lea.hbm %s1, %s609
          %s612 = sshll.u32 %s605, 4
          %s613 = int_to_ptr.vmem [resolvable:$true] %s612
          %615 = dma.hbm_to_vmem [thread:$0]  %s610, 16, %s613, %s603
        $region88: #{tpu_custom_call.1} parent=79 // pred_fallthru
          _
      $region80: #{tpu_custom_call.1} parent=5 // pred_fallthru
        _
      %p616 = scmp.le.s32.totalorder 1, %s36
      %p617 = scmp.lt.s32.totalorder %s36, 3
      %p618 = pnand %p616, %p617
      %p619 = pneg %p618
      // Predicated region
      $region89: #{tpu_custom_call.1} parent=5 // pred_check
        _
      $region90: #{tpu_custom_call.1} parent=5 // pred_check_branch
        %621 = sbr.rel (%p618) target = $region92
      $region91: #{tpu_custom_call.1} parent=5 // pred_region
        %s622 = ssub.s32 %s36, 1
        %s623 = sand.u32 %s61, 1
        %s624 = scalar_lea.sflag [#allocation5], %s623
        %s625 = sand.u32 %s61, 1
        %s626 = smul.addr %s625, 4
        %s627 = scalar_lea.vmem [#allocation4], %s626
        // Predicated region
        $region93: #{tpu_custom_call.1} parent=91 // pred_check
          %p628 = pneg %p74
        $region94: #{tpu_custom_call.1} parent=91 // pred_check_branch
          %630 = sbr.rel (%p628) target = $region96
        $region95: #{tpu_custom_call.1} parent=91 // pred_region
          %631 = dma.done %s624, 64
        $region96: #{tpu_custom_call.1} parent=91 // pred_fallthru
          _
        %s632 = sand.u32 %s41, 1
        %s633 = scalar_lea.sflag [#allocation8], %s632
        %s634 = sand.u32 %s87, 1
        %s635 = scalar_lea.vmem [#allocation7], %s634
        // Predicated region
        $region97: #{tpu_custom_call.1} parent=91 // pred_check
          %p636 = pneg %p100
        $region98: #{tpu_custom_call.1} parent=91 // pred_check_branch
          %638 = sbr.rel (%p636) target = $region100
        $region99: #{tpu_custom_call.1} parent=91 // pred_region
          %639 = dma.done %s633, 16
        $region100: #{tpu_custom_call.1} parent=91 // pred_fallthru
          _
        // Predicated region
        $region101: #{tpu_custom_call.1} parent=91 // pred_check
          %p640 = pneg %p121
        $region102: #{tpu_custom_call.1} parent=91 // pred_check_branch
          %642 = sbr.rel (%p640) target = $region104
        $region103: #{tpu_custom_call.1} parent=91 // pred_region
          %643 = dma.done [#allocation8], 16
        $region104: #{tpu_custom_call.1} parent=91 // pred_fallthru
          _
        // Predicated region
        $region105: #{tpu_custom_call.1} parent=91 // pred_check
          %p644 = pneg %p142
        $region106: #{tpu_custom_call.1} parent=91 // pred_check_branch
          %646 = sbr.rel (%p644) target = $region108
        $region107: #{tpu_custom_call.1} parent=91 // pred_region
          %647 = dma.done [#allocation11], 16
        $region108: #{tpu_custom_call.1} parent=91 // pred_fallthru
          _
        // Predicated region
        $region109: #{tpu_custom_call.1} parent=91 // pred_check
          %p648 = pneg %p184
        $region110: #{tpu_custom_call.1} parent=91 // pred_check_branch
          %650 = sbr.rel (%p648) target = $region112
        $region111: #{tpu_custom_call.1} parent=91 // pred_region
          %651 = dma.done [#allocation11], 16
        $region112: #{tpu_custom_call.1} parent=91 // pred_fallthru
          _
        // Predicated region
        $region113: #{tpu_custom_call.1} parent=91 // pred_check
          %p652 = pneg %p226
        $region114: #{tpu_custom_call.1} parent=91 // pred_check_branch
          %654 = sbr.rel (%p652) target = $region116
        $region115: #{tpu_custom_call.1} parent=91 // pred_region
          %655 = dma.done [#allocation14], 16
        $region116: #{tpu_custom_call.1} parent=91 // pred_fallthru
          _
        // Predicated region
        $region117: #{tpu_custom_call.1} parent=91 // pred_check
          %p656 = pneg %p268
        $region118: #{tpu_custom_call.1} parent=91 // pred_check_branch
          %658 = sbr.rel (%p656) target = $region120
        $region119: #{tpu_custom_call.1} parent=91 // pred_region
          %659 = dma.done [#allocation14], 16
        $region120: #{tpu_custom_call.1} parent=91 // pred_fallthru
          _
        // Predicated region
        $region121: #{tpu_custom_call.1} parent=91 // pred_check
          %p660 = pneg %p373
        $region122: #{tpu_custom_call.1} parent=91 // pred_check_branch
          %662 = sbr.rel (%p660) target = $region124
        $region123: #{tpu_custom_call.1} parent=91 // pred_region
          %663 = dma.done [#allocation17], 256
        $region124: #{tpu_custom_call.1} parent=91 // pred_fallthru
          _
        %s664 = sand.u32 %s61, 1
        %s665 = scalar_lea.sflag [#allocation5], %s664
        %s666 = sand.u32 %s61, 1
        %s667 = smul.addr %s666, 4
        %s668 = scalar_lea.vmem [#allocation4], %s667
        %p669 = pneg %p74
        %p670 = pneg %p71
        %s671 = sand.u32 %s41, 1
        %s672 = scalar_lea.sflag [#allocation8], %s671
        %s673 = sand.u32 %s87, 1
        %s674 = scalar_lea.vmem [#allocation7], %s673
        %p675 = pneg %p100
        %p676 = pneg %p97
        %p677 = pneg %p121
        %p678 = pneg %p118
        %p679 = pneg %p142
        %p680 = pneg %p139
        %p681 = pneg %p163
        %p682 = pneg %p160
        %p683 = pneg %p184
        %p684 = pneg %p181
        %p685 = pneg %p205
        %p686 = pneg %p202
        %p687 = pneg %p226
        %p688 = pneg %p223
        %p689 = pneg %p247
        %p690 = pneg %p244
        %p691 = pneg %p268
        %p692 = pneg %p265
        %p693 = pneg %p289
        %p694 = pneg %p286
        %p695 = pneg %p310
        %p696 = pneg %p307
        %p697 = pneg %p331
        %p698 = pneg %p328
        %p699 = pneg %p352
        %p700 = pneg %p349
        %p701 = pneg %p373
        %p702 = pneg %p370
        %p703 = pneg %p394
        %p704 = pneg %p391
        %p705 = pneg %p415
        %p706 = pneg %p412
        %p707 = pneg %p436
        %p708 = pneg %p433
        %p709 = pneg %p464
        %p710 = pneg %p461
        %s711 = sand.u32 %s451, 1
        %s712 = scalar_lea.sflag [#allocation6], %s711
        %s713 = sand.u32 %s451, 1
        %s714 = smul.addr %s713, 8
        %s715 = scalar_lea.vmem [#allocation18], %s714
        %p717 = scmp.eq.s32.totalorder %s46, 0
        // Predicated region
        $region125: #{tpu_custom_call.1} parent=91 // pred_check
          %p718 = pneg %p717
        $region126: #{tpu_custom_call.1} parent=91 // pred_check_branch
          %720 = sbr.rel (%p718) target = $region128
        $region127: #{tpu_custom_call.1} parent=91 // pred_region
          %v721 = vld [vmem:[%s627] sm:$0xf]
          %v722 = vunpack.c.l.bf16 %v721
          %v723 = vld [vmem:[#allocation9] sm:$0x1]
          %v724 = vld [vmem:[#allocation10] sm:$0x1]
          %vm725 = vcmask 261120
          %v726 = vsel %vm725, %v722, 0.0
          %727 = vadd.xlane.f32.xlu0 %v726
          %v728 = vpop.xlane.xlu0 %727
          %v729 = vrcp.pop 32.0
          %v730 = vmul.f32 %v728, %v729
          %v731 = vsub.f32 %v722, %v730
          %v732 = vmul.f32 %v731, %v731
          %v733 = vsel %vm725, %v732, 0.0
          %734 = vadd.xlane.f32.xlu0 %v733
          %v735 = vpop.xlane.xlu0 %734
          %v736 = vmul.f32 %v735, %v729
          %v737 = vadd.f32 %v736, 1e-06
          %v738 = vrsqrt.pop %v737
          %v739 = vmul.f32 %v731, %v738
          %v741 = vlaneseq
          %v742 = vshrl.u32 %v741, 7
          %v743 = vsub.s32 0, %v742
          %v744 = vrot.slane %v723, %v743
          %v746 = vmul.f32 %v739, %v744
          %v748 = vlaneseq
          %v749 = vshrl.u32 %v748, 7
          %v750 = vsub.s32 0, %v749
          %v751 = vrot.slane %v724, %v750
          %v753 = vadd.f32 %v746, %v751
          %v754 = vpack.c.bf16 %v753, %v753
          %v755 = vld [vmem:[%s6] sm:$0xf]
          %v756 = vld [vmem:[%s6 + $0x4] sm:$0xf]
          %v757 = vld [vmem:[%s6 + $0x8] sm:$0xf]
          %v758 = vld [vmem:[%s6 + $0xc] sm:$0xf]
          %v759 = vld [vmem:[#allocation13] sm:$0x1]
          %v761 = vlaneseq
          %v762 = vshrl.u32 %v761, 7
          %v763 = vsub.s32 0, %v762
          %v764 = vrot.slane %v759, %v763
          %v770 = vunpack.c.l.b16 %v755
          %v771 = vunpack.c.l.b16 %v756
          %v772 = vunpack.c.l.b16 %v757
          %v773 = vunpack.c.l.b16 %v758
          %v774 = vpack.c.b16 %v771, %v770
          %v775 = vpack.c.b16 %v773, %v772
          %v779 = vsel %vm725, %v754, 0
          %781 = vmatprep.subr.bf16.mxu0 0
          %782 = vmatpush1.bf16.msra.mxu0 0
          %783 = vmatprep.subr.bf16.mxu0 0
          %784 = vmatpush1.bf16.msra.mxu0 0
          %785 = vmatprep.subr.bf16.mxu0 0
          %786 = vmatpush1.bf16.msra.mxu0 0
          %787 = vmatprep.subr.bf16.mxu0 0
          %788 = vmatpush1.bf16.msra.mxu0 0
          %789 = vmatprep.subr.bf16.mxu0 0
          %790 = vmatpush1.bf16.msra.mxu0 0
          %791 = vmatprep.subr.bf16.mxu0 0
          %792 = vmatpush1.bf16.msra.mxu0 0
          %793 = vmatprep.subr.bf16.mxu0 0
          %794 = vmatpush1.bf16.msra.mxu0 %v775
          %795 = vmatprep.subr.bf16.mxu0 0
          %796 = vmatpush1.bf16.msra.mxu0 %v774
          %797 = vmatprep.subr.bf16.mxu0 0
          %798 = vmatpush2.bf16.msra.mxu0 0
          %799 = vmatprep.subr.bf16.mxu0 0
          %800 = vmatpush2.bf16.msra.mxu0 0
          %801 = vmatprep.subr.bf16.mxu0 0
          %802 = vmatpush2.bf16.msra.mxu0 0
          %803 = vmatprep.subr.bf16.mxu0 0
          %804 = vmatpush2.bf16.msra.mxu0 0
          %805 = vmatprep.subr.bf16.mxu0 0
          %806 = vmatpush2.bf16.msra.mxu0 0
          %807 = vmatprep.subr.bf16.mxu0 0
          %808 = vmatpush2.bf16.msra.mxu0 0
          %809 = vmatprep.subr.bf16.mxu0 0
          %810 = vmatpush2.bf16.msra.mxu0 0
          %811 = vmatprep.subr.bf16.mxu0 0
          %812 = vmatpush2.bf16.msra.mxu0 0
          %813 = vmatprep.mubr.bf16.mxu0 0
          %814 = vmatmul.mubr.bf16.gmra.mxu0 %v779
          %v815 = vpop.f32.mrf.mxu0
          %v816 = vadd.f32 %v764, %v815
          %v817 = vpop.f32.mrf.mxu0
          %v818 = vpop.f32.mrf.mxu0
          %v819 = vpop.f32.mrf.mxu0
          %820 = vdwg.mxu0
          %v821 = vld [vmem:[%s8] sm:$0xf]
          %v822 = vld [vmem:[%s8 + $0x4] sm:$0xf]
          %v823 = vld [vmem:[%s8 + $0x8] sm:$0xf]
          %v824 = vld [vmem:[%s8 + $0xc] sm:$0xf]
          %v825 = vld [vmem:[#allocation15] sm:$0x1]
          %v827 = vlaneseq
          %v828 = vshrl.u32 %v827, 7
          %v829 = vsub.s32 0, %v828
          %v830 = vrot.slane %v825, %v829
          %v836 = vunpack.c.l.b16 %v821
          %v837 = vunpack.c.l.b16 %v822
          %v838 = vunpack.c.l.b16 %v823
          %v839 = vunpack.c.l.b16 %v824
          %v840 = vpack.c.b16 %v837, %v836
          %v841 = vpack.c.b16 %v839, %v838
          %844 = vmatprep.subr.bf16.mxu0 0
          %845 = vmatpush1.bf16.msra.mxu0 0
          %846 = vmatprep.subr.bf16.mxu0 0
          %847 = vmatpush1.bf16.msra.mxu0 0
          %848 = vmatprep.subr.bf16.mxu0 0
          %849 = vmatpush1.bf16.msra.mxu0 0
          %850 = vmatprep.subr.bf16.mxu0 0
          %851 = vmatpush1.bf16.msra.mxu0 0
          %852 = vmatprep.subr.bf16.mxu0 0
          %853 = vmatpush1.bf16.msra.mxu0 0
          %854 = vmatprep.subr.bf16.mxu0 0
          %855 = vmatpush1.bf16.msra.mxu0 0
          %856 = vmatprep.subr.bf16.mxu0 0
          %857 = vmatpush1.bf16.msra.mxu0 %v841
          %858 = vmatprep.subr.bf16.mxu0 0
          %859 = vmatpush1.bf16.msra.mxu0 %v840
          %860 = vmatprep.subr.bf16.mxu0 0
          %861 = vmatpush2.bf16.msra.mxu0 0
          %862 = vmatprep.subr.bf16.mxu0 0
          %863 = vmatpush2.bf16.msra.mxu0 0
          %864 = vmatprep.subr.bf16.mxu0 0
          %865 = vmatpush2.bf16.msra.mxu0 0
          %866 = vmatprep.subr.bf16.mxu0 0
          %867 = vmatpush2.bf16.msra.mxu0 0
          %868 = vmatprep.subr.bf16.mxu0 0
          %869 = vmatpush2.bf16.msra.mxu0 0
          %870 = vmatprep.subr.bf16.mxu0 0
          %871 = vmatpush2.bf16.msra.mxu0 0
          %872 = vmatprep.subr.bf16.mxu0 0
          %873 = vmatpush2.bf16.msra.mxu0 0
          %874 = vmatprep.subr.bf16.mxu0 0
          %875 = vmatpush2.bf16.msra.mxu0 0
          %876 = vmatprep.mubr.bf16.mxu0 0
          %877 = vmatmul.mubr.bf16.gmra.mxu0 %v779
          %v878 = vpop.f32.mrf.mxu0
          %v879 = vadd.f32 %v830, %v878
          %v880 = vpop.f32.mrf.mxu0
          %v881 = vpop.f32.mrf.mxu0
          %v882 = vpop.f32.mrf.mxu0
          %883 = vdwg.mxu0
          %884 = vxpose.xlu0.b32.start [1/16] %v816, 128
          %885 = vxpose.xlu0.b32.cont [2/16] 0.0, 128
          %886 = vxpose.xlu0.b32.cont [3/16] 0.0, 128
          %887 = vxpose.xlu0.b32.cont [4/16] 0.0, 128
          %888 = vxpose.xlu0.b32.cont [5/16] 0.0, 128
          %889 = vxpose.xlu0.b32.cont [6/16] 0.0, 128
          %890 = vxpose.xlu0.b32.cont [7/16] 0.0, 128
          %891 = vxpose.xlu0.b32.cont [8/16] 0.0, 128
          %892 = vxpose.xlu0.b32.cont [9/16] 0.0, 128
          %893 = vxpose.xlu0.b32.cont [10/16] 0.0, 128
          %894 = vxpose.xlu0.b32.cont [11/16] 0.0, 128
          %895 = vxpose.xlu0.b32.cont [12/16] 0.0, 128
          %896 = vxpose.xlu0.b32.cont [13/16] 0.0, 128
          %897 = vxpose.xlu0.b32.cont [14/16] 0.0, 128
          %898 = vxpose.xlu0.b32.cont [15/16] 0.0, 128
          %899 = vxpose.xlu0.b32.end [16/16] 0.0, 128
          %v900 = vpop.trf.xlu0
          %v901 = vpop.trf.xlu0
          %v902 = vpop.trf.xlu0
          %v903 = vpop.trf.xlu0
          %v904 = vpop.trf.xlu0
          %v905 = vpop.trf.xlu0
          %v906 = vpop.trf.xlu0
          %v907 = vpop.trf.xlu0
          %v908 = vpop.trf.xlu0
          %v909 = vpop.trf.xlu0
          %v910 = vpop.trf.xlu0
          %v911 = vpop.trf.xlu0
          %v912 = vpop.trf.xlu0
          %v913 = vpop.trf.xlu0
          %v914 = vpop.trf.xlu0
          %v915 = vpop.trf.xlu0
          %v916 = vpack.c.bf16 %v900, %v900
          %vm917 = vcmask 60416
          %918 = vst.msk [vmem:[#allocation2] sm:$0xf] %vm917, %v916
          %v919 = vpack.c.bf16 %v879, %v879
          %920 = vst.msk [vmem:[#allocation3] sm:$0xf] %vm917, %v919
          %922 = vrot.lane.b32.xlu0 %v816, 120
          %v923 = vpop.permute.xlu0 %922
          %925 = vxpose.xlu0.b32.start [1/16] %v923, 128
          %926 = vxpose.xlu0.b32.cont [2/16] 0.0, 128
          %927 = vxpose.xlu0.b32.cont [3/16] 0.0, 128
          %928 = vxpose.xlu0.b32.cont [4/16] 0.0, 128
          %929 = vxpose.xlu0.b32.cont [5/16] 0.0, 128
          %930 = vxpose.xlu0.b32.cont [6/16] 0.0, 128
          %931 = vxpose.xlu0.b32.cont [7/16] 0.0, 128
          %932 = vxpose.xlu0.b32.cont [8/16] 0.0, 128
          %933 = vxpose.xlu0.b32.cont [9/16] 0.0, 128
          %934 = vxpose.xlu0.b32.cont [10/16] 0.0, 128
          %935 = vxpose.xlu0.b32.cont [11/16] 0.0, 128
          %936 = vxpose.xlu0.b32.cont [12/16] 0.0, 128
          %937 = vxpose.xlu0.b32.cont [13/16] 0.0, 128
          %938 = vxpose.xlu0.b32.cont [14/16] 0.0, 128
          %939 = vxpose.xlu0.b32.cont [15/16] 0.0, 128
          %940 = vxpose.xlu0.b32.end [16/16] 0.0, 128
          %v941 = vpop.trf.xlu0
          %v942 = vpop.trf.xlu0
          %v943 = vpop.trf.xlu0
          %v944 = vpop.trf.xlu0
          %v945 = vpop.trf.xlu0
          %v946 = vpop.trf.xlu0
          %v947 = vpop.trf.xlu0
          %v948 = vpop.trf.xlu0
          %v949 = vpop.trf.xlu0
          %v950 = vpop.trf.xlu0
          %v951 = vpop.trf.xlu0
          %v952 = vpop.trf.xlu0
          %v953 = vpop.trf.xlu0
          %v954 = vpop.trf.xlu0
          %v955 = vpop.trf.xlu0
          %v956 = vpop.trf.xlu0
          %v957 = vpack.c.bf16 %v941, %v941
          %s958 = scalar_lea.vmem [#allocation2], 4
          %959 = vst.msk [vmem:[%s958] sm:$0xf] %vm917, %v957
          %v961 = vunpack.c.l.b16 %v919
          %v962 = vpack.c.b16 %v961, %v961
          %963 = vrot.lane.b32.xlu0 %v962, 120
          %v964 = vpop.permute.xlu0 %963
          %s966 = scalar_lea.vmem [#allocation3], 4
          %967 = vst.msk [vmem:[%s966] sm:$0xf] %vm917, %v964
          %968 = vrot.lane.b32.xlu0 %v816, 112
          %v969 = vpop.permute.xlu0 %968
          %971 = vxpose.xlu0.b32.start [1/16] %v969, 128
          %972 = vxpose.xlu0.b32.cont [2/16] 0.0, 128
          %973 = vxpose.xlu0.b32.cont [3/16] 0.0, 128
          %974 = vxpose.xlu0.b32.cont [4/16] 0.0, 128
          %975 = vxpose.xlu0.b32.cont [5/16] 0.0, 128
          %976 = vxpose.xlu0.b32.cont [6/16] 0.0, 128
          %977 = vxpose.xlu0.b32.cont [7/16] 0.0, 128
          %978 = vxpose.xlu0.b32.cont [8/16] 0.0, 128
          %979 = vxpose.xlu0.b32.cont [9/16] 0.0, 128
          %980 = vxpose.xlu0.b32.cont [10/16] 0.0, 128
          %981 = vxpose.xlu0.b32.cont [11/16] 0.0, 128
          %982 = vxpose.xlu0.b32.cont [12/16] 0.0, 128
          %983 = vxpose.xlu0.b32.cont [13/16] 0.0, 128
          %984 = vxpose.xlu0.b32.cont [14/16] 0.0, 128
          %985 = vxpose.xlu0.b32.cont [15/16] 0.0, 128
          %986 = vxpose.xlu0.b32.end [16/16] 0.0, 128
          %v987 = vpop.trf.xlu0
          %v988 = vpop.trf.xlu0
          %v989 = vpop.trf.xlu0
          %v990 = vpop.trf.xlu0
          %v991 = vpop.trf.xlu0
          %v992 = vpop.trf.xlu0
          %v993 = vpop.trf.xlu0
          %v994 = vpop.trf.xlu0
          %v995 = vpop.trf.xlu0
          %v996 = vpop.trf.xlu0
          %v997 = vpop.trf.xlu0
          %v998 = vpop.trf.xlu0
          %v999 = vpop.trf.xlu0
          %v1000 = vpop.trf.xlu0
          %v1001 = vpop.trf.xlu0
          %v1002 = vpop.trf.xlu0
          %v1003 = vpack.c.bf16 %v987, %v987
          %s1004 = scalar_lea.vmem [#allocation2], 8
          %1005 = vst.msk [vmem:[%s1004] sm:$0xf] %vm917, %v1003
          %1006 = vrot.lane.b32.xlu0 %v962, 112
          %v1007 = vpop.permute.xlu0 %1006
          %s1009 = scalar_lea.vmem [#allocation3], 8
          %1010 = vst.msk [vmem:[%s1009] sm:$0xf] %vm917, %v1007
          %1011 = vrot.lane.b32.xlu0 %v816, 104
          %v1012 = vpop.permute.xlu0 %1011
          %1014 = vxpose.xlu0.b32.start [1/16] %v1012, 128
          %1015 = vxpose.xlu0.b32.cont [2/16] 0.0, 128
          %1016 = vxpose.xlu0.b32.cont [3/16] 0.0, 128
          %1017 = vxpose.xlu0.b32.cont [4/16] 0.0, 128
          %1018 = vxpose.xlu0.b32.cont [5/16] 0.0, 128
          %1019 = vxpose.xlu0.b32.cont [6/16] 0.0, 128
          %1020 = vxpose.xlu0.b32.cont [7/16] 0.0, 128
          %1021 = vxpose.xlu0.b32.cont [8/16] 0.0, 128
          %1022 = vxpose.xlu0.b32.cont [9/16] 0.0, 128
          %1023 = vxpose.xlu0.b32.cont [10/16] 0.0, 128
          %1024 = vxpose.xlu0.b32.cont [11/16] 0.0, 128
          %1025 = vxpose.xlu0.b32.cont [12/16] 0.0, 128
          %1026 = vxpose.xlu0.b32.cont [13/16] 0.0, 128
          %1027 = vxpose.xlu0.b32.cont [14/16] 0.0, 128
          %1028 = vxpose.xlu0.b32.cont [15/16] 0.0, 128
          %1029 = vxpose.xlu0.b32.end [16/16] 0.0, 128
          %v1030 = vpop.trf.xlu0
          %v1031 = vpop.trf.xlu0
          %v1032 = vpop.trf.xlu0
          %v1033 = vpop.trf.xlu0
          %v1034 = vpop.trf.xlu0
          %v1035 = vpop.trf.xlu0
          %v1036 = vpop.trf.xlu0
          %v1037 = vpop.trf.xlu0
          %v1038 = vpop.trf.xlu0
          %v1039 = vpop.trf.xlu0
          %v1040 = vpop.trf.xlu0
          %v1041 = vpop.trf.xlu0
          %v1042 = vpop.trf.xlu0
          %v1043 = vpop.trf.xlu0
          %v1044 = vpop.trf.xlu0
          %v1045 = vpop.trf.xlu0
          %v1046 = vpack.c.bf16 %v1030, %v1030
          %s1047 = scalar_lea.vmem [#allocation2], 12
          %1048 = vst.msk [vmem:[%s1047] sm:$0xf] %vm917, %v1046
          %1049 = vrot.lane.b32.xlu0 %v962, 104
          %v1050 = vpop.permute.xlu0 %1049
          %s1052 = scalar_lea.vmem [#allocation3], 12
          %1053 = vst.msk [vmem:[%s1052] sm:$0xf] %vm917, %v1050
        $region128: #{tpu_custom_call.1} parent=91 // pred_fallthru
          _
        %v1054 = vld [vmem:[%s635] sm:$0x1]
        %vm1055 = vcmp.gt.f32.partialorder %v1054, 0.5
        %v1056 = vsel %vm1055, -1e+18, 0.0
        %s1057 = smul.u32 %s46, 8
        %s1058 = sshra.s32 %s1057, 3
        %s1059 = sand.u32 %s1057, 7
        %s1060 = smul.addr %s1058, 4
        %s1061 = scalar_lea.vmem %s627, %s1060 [#allocation4]
        %v1062 = vld [vmem:[%s1061] sm:$0xf]
        %v1063 = vunpack.c.l.bf16 %v1062
        %v1064 = vld [vmem:[#allocation9] sm:$0x1]
        %v1065 = vld [vmem:[#allocation10] sm:$0x1]
        %vm1066 = vcmask 261120
        %v1067 = vsel %vm1066, %v1063, 0.0
        %1068 = vadd.xlane.f32.xlu0 %v1067
        %v1069 = vpop.xlane.xlu0 %1068
        %v1070 = vrcp.pop 32.0
        %v1071 = vmul.f32 %v1069, %v1070
        %v1072 = vsub.f32 %v1063, %v1071
        %v1073 = vmul.f32 %v1072, %v1072
        %v1074 = vsel %vm1066, %v1073, 0.0
        %1075 = vadd.xlane.f32.xlu0 %v1074
        %v1076 = vpop.xlane.xlu0 %1075
        %v1077 = vmul.f32 %v1076, %v1070
        %v1078 = vadd.f32 %v1077, 1e-06
        %v1079 = vrsqrt.pop %v1078
        %v1080 = vmul.f32 %v1072, %v1079
        %v1082 = vlaneseq
        %v1083 = vshrl.u32 %v1082, 7
        %v1084 = vsub.s32 0, %v1083
        %v1085 = vrot.slane %v1064, %v1084
        %v1087 = vmul.f32 %v1080, %v1085
        %v1089 = vlaneseq
        %v1090 = vshrl.u32 %v1089, 7
        %v1091 = vsub.s32 0, %v1090
        %v1092 = vrot.slane %v1065, %v1091
        %v1094 = vadd.f32 %v1087, %v1092
        %v1095 = vpack.c.bf16 %v1094, %v1094
        %v1096 = vld [vmem:[%s4] sm:$0xf]
        %v1097 = vld [vmem:[%s4 + $0x4] sm:$0xf]
        %v1098 = vld [vmem:[%s4 + $0x8] sm:$0xf]
        %v1099 = vld [vmem:[%s4 + $0xc] sm:$0xf]
        %v1100 = vld [vmem:[#allocation12] sm:$0x1]
        %v1102 = vlaneseq
        %v1103 = vshrl.u32 %v1102, 7
        %v1104 = vsub.s32 0, %v1103
        %v1105 = vrot.slane %v1100, %v1104
        %v1111 = vunpack.c.l.b16 %v1096
        %v1112 = vunpack.c.l.b16 %v1097
        %v1113 = vunpack.c.l.b16 %v1098
        %v1114 = vunpack.c.l.b16 %v1099
        %v1115 = vpack.c.b16 %v1112, %v1111
        %v1116 = vpack.c.b16 %v1114, %v1113
        %v1120 = vsel %vm1066, %v1095, 0
        %1122 = vmatprep.subr.bf16.mxu0 0
        %1123 = vmatpush1.bf16.msra.mxu0 0
        %1124 = vmatprep.subr.bf16.mxu0 0
        %1125 = vmatpush1.bf16.msra.mxu0 0
        %1126 = vmatprep.subr.bf16.mxu0 0
        %1127 = vmatpush1.bf16.msra.mxu0 0
        %1128 = vmatprep.subr.bf16.mxu0 0
        %1129 = vmatpush1.bf16.msra.mxu0 0
        %1130 = vmatprep.subr.bf16.mxu0 0
        %1131 = vmatpush1.bf16.msra.mxu0 0
        %1132 = vmatprep.subr.bf16.mxu0 0
        %1133 = vmatpush1.bf16.msra.mxu0 0
        %1134 = vmatprep.subr.bf16.mxu0 0
        %1135 = vmatpush1.bf16.msra.mxu0 %v1116
        %1136 = vmatprep.subr.bf16.mxu0 0
        %1137 = vmatpush1.bf16.msra.mxu0 %v1115
        %1138 = vmatprep.subr.bf16.mxu0 0
        %1139 = vmatpush2.bf16.msra.mxu0 0
        %1140 = vmatprep.subr.bf16.mxu0 0
        %1141 = vmatpush2.bf16.msra.mxu0 0
        %1142 = vmatprep.subr.bf16.mxu0 0
        %1143 = vmatpush2.bf16.msra.mxu0 0
        %1144 = vmatprep.subr.bf16.mxu0 0
        %1145 = vmatpush2.bf16.msra.mxu0 0
        %1146 = vmatprep.subr.bf16.mxu0 0
        %1147 = vmatpush2.bf16.msra.mxu0 0
        %1148 = vmatprep.subr.bf16.mxu0 0
        %1149 = vmatpush2.bf16.msra.mxu0 0
        %1150 = vmatprep.subr.bf16.mxu0 0
        %1151 = vmatpush2.bf16.msra.mxu0 0
        %1152 = vmatprep.subr.bf16.mxu0 0
        %1153 = vmatpush2.bf16.msra.mxu0 0
        %1154 = vmatprep.mubr.bf16.mxu0 0
        %1155 = vmatmul.mubr.bf16.gmra.mxu0 %v1120
        %v1156 = vpop.f32.mrf.mxu0
        %v1157 = vadd.f32 %v1105, %v1156
        %v1158 = vpop.f32.mrf.mxu0
        %v1159 = vpop.f32.mrf.mxu0
        %v1160 = vpop.f32.mrf.mxu0
        %1161 = vdwg.mxu0
        %v1162 = vmul.f32 %v1157, 0.35355338
        %1164 = vrot.lane.b32.xlu0 %v1162, 120
        %v1165 = vpop.permute.xlu0 %1164
        %1167 = vrot.lane.b32.xlu0 %v1162, 112
        %v1168 = vpop.permute.xlu0 %1167
        %1170 = vrot.lane.b32.xlu0 %v1162, 104
        %v1171 = vpop.permute.xlu0 %1170
        %v1173 = vpack.c.bf16 %v1162, %v1162
        %v1174 = vpack.c.bf16 %v1165, %v1165
        %v1175 = vpack.c.bf16 %v1168, %v1168
        %v1176 = vpack.c.bf16 %v1171, %v1171
        %v1177 = vld [vmem:[#allocation2] sm:$0xf]
        %v1178 = vld [vmem:[#allocation2 + $0x4] sm:$0xf]
        %v1179 = vld [vmem:[#allocation2 + $0x8] sm:$0xf]
        %v1180 = vld [vmem:[#allocation2 + $0xc] sm:$0xf]
        %v1182 = vlaneseq
        %v1183 = vshrl.u32 %v1182, 7
        %v1184 = vsub.s32 0, %v1183
        %v1185 = vrot.slane %v1056, %v1184
        %vm1187 = vcmask 64512
        %v1189 = vsel %vm1187, %v1173, 0
        %vm1191 = vcmask 1043456
        %v1193 = vsel %vm1191, %v1177, 0
        %1195 = vmatprep.subr.bf16.mxu0 0
        %1196 = vmatpush1.bf16.msra.mxu0 0
        %1197 = vmatprep.subr.bf16.mxu0 0
        %1198 = vmatpush1.bf16.msra.mxu0 0
        %1199 = vmatprep.subr.bf16.mxu0 0
        %1200 = vmatpush1.bf16.msra.mxu0 0
        %1201 = vmatprep.subr.bf16.mxu0 0
        %1202 = vmatpush1.bf16.msra.mxu0 0
        %1203 = vmatprep.subr.bf16.mxu0 0
        %1204 = vmatpush1.bf16.msra.mxu0 0
        %1205 = vmatprep.subr.bf16.mxu0 0
        %1206 = vmatpush1.bf16.msra.mxu0 0
        %1207 = vmatprep.subr.bf16.mxu0 0
        %1208 = vmatpush1.bf16.msra.mxu0 0
        %1209 = vmatprep.subr.bf16.mxu0 0
        %1210 = vmatpush1.bf16.msra.mxu0 %v1193
        %1211 = vmatprep.subr.bf16.mxu0 0
        %1212 = vmatpush2.bf16.msra.mxu0 0
        %1213 = vmatprep.subr.bf16.mxu0 0
        %1214 = vmatpush2.bf16.msra.mxu0 0
        %1215 = vmatprep.subr.bf16.mxu0 0
        %1216 = vmatpush2.bf16.msra.mxu0 0
        %1217 = vmatprep.subr.bf16.mxu0 0
        %1218 = vmatpush2.bf16.msra.mxu0 0
        %1219 = vmatprep.subr.bf16.mxu0 0
        %1220 = vmatpush2.bf16.msra.mxu0 0
        %1221 = vmatprep.subr.bf16.mxu0 0
        %1222 = vmatpush2.bf16.msra.mxu0 0
        %1223 = vmatprep.subr.bf16.mxu0 0
        %1224 = vmatpush2.bf16.msra.mxu0 0
        %1225 = vmatprep.subr.bf16.mxu0 0
        %1226 = vmatpush2.bf16.msra.mxu0 0
        %1227 = vmatprep.mubr.bf16.mxu0 0
        %1228 = vmatmul.mubr.bf16.gmra.mxu0 %v1189
        %v1229 = vpop.f32.mrf.mxu0
        %v1230 = vadd.f32 %v1185, %v1229
        %v1231 = vpop.f32.mrf.mxu0
        %v1232 = vpop.f32.mrf.mxu0
        %v1233 = vpop.f32.mrf.mxu0
        %1234 = vdwg.mxu0
        %v1236 = vsel %vm1187, %v1174, 0
        %v1239 = vsel %vm1191, %v1178, 0
        %1241 = vmatprep.subr.bf16.mxu0 0
        %1242 = vmatpush1.bf16.msra.mxu0 0
        %1243 = vmatprep.subr.bf16.mxu0 0
        %1244 = vmatpush1.bf16.msra.mxu0 0
        %1245 = vmatprep.subr.bf16.mxu0 0
        %1246 = vmatpush1.bf16.msra.mxu0 0
        %1247 = vmatprep.subr.bf16.mxu0 0
        %1248 = vmatpush1.bf16.msra.mxu0 0
        %1249 = vmatprep.subr.bf16.mxu0 0
        %1250 = vmatpush1.bf16.msra.mxu0 0
        %1251 = vmatprep.subr.bf16.mxu0 0
        %1252 = vmatpush1.bf16.msra.mxu0 0
        %1253 = vmatprep.subr.bf16.mxu0 0
        %1254 = vmatpush1.bf16.msra.mxu0 0
        %1255 = vmatprep.subr.bf16.mxu0 0
        %1256 = vmatpush1.bf16.msra.mxu0 %v1239
        %1257 = vmatprep.subr.bf16.mxu0 0
        %1258 = vmatpush2.bf16.msra.mxu0 0
        %1259 = vmatprep.subr.bf16.mxu0 0
        %1260 = vmatpush2.bf16.msra.mxu0 0
        %1261 = vmatprep.subr.bf16.mxu0 0
        %1262 = vmatpush2.bf16.msra.mxu0 0
        %1263 = vmatprep.subr.bf16.mxu0 0
        %1264 = vmatpush2.bf16.msra.mxu0 0
        %1265 = vmatprep.subr.bf16.mxu0 0
        %1266 = vmatpush2.bf16.msra.mxu0 0
        %1267 = vmatprep.subr.bf16.mxu0 0
        %1268 = vmatpush2.bf16.msra.mxu0 0
        %1269 = vmatprep.subr.bf16.mxu0 0
        %1270 = vmatpush2.bf16.msra.mxu0 0
        %1271 = vmatprep.subr.bf16.mxu0 0
        %1272 = vmatpush2.bf16.msra.mxu0 0
        %1273 = vmatprep.mubr.bf16.mxu0 0
        %1274 = vmatmul.mubr.bf16.gmra.mxu0 %v1236
        %v1275 = vpop.f32.mrf.mxu0
        %v1276 = vadd.f32 %v1185, %v1275
        %v1277 = vpop.f32.mrf.mxu0
        %v1278 = vpop.f32.mrf.mxu0
        %v1279 = vpop.f32.mrf.mxu0
        %1280 = vdwg.mxu0
        %v1282 = vsel %vm1187, %v1175, 0
        %v1285 = vsel %vm1191, %v1179, 0
        %1287 = vmatprep.subr.bf16.mxu0 0
        %1288 = vmatpush1.bf16.msra.mxu0 0
        %1289 = vmatprep.subr.bf16.mxu0 0
        %1290 = vmatpush1.bf16.msra.mxu0 0
        %1291 = vmatprep.subr.bf16.mxu0 0
        %1292 = vmatpush1.bf16.msra.mxu0 0
        %1293 = vmatprep.subr.bf16.mxu0 0
        %1294 = vmatpush1.bf16.msra.mxu0 0
        %1295 = vmatprep.subr.bf16.mxu0 0
        %1296 = vmatpush1.bf16.msra.mxu0 0
        %1297 = vmatprep.subr.bf16.mxu0 0
        %1298 = vmatpush1.bf16.msra.mxu0 0
        %1299 = vmatprep.subr.bf16.mxu0 0
        %1300 = vmatpush1.bf16.msra.mxu0 0
        %1301 = vmatprep.subr.bf16.mxu0 0
        %1302 = vmatpush1.bf16.msra.mxu0 %v1285
        %1303 = vmatprep.subr.bf16.mxu0 0
        %1304 = vmatpush2.bf16.msra.mxu0 0
        %1305 = vmatprep.subr.bf16.mxu0 0
        %1306 = vmatpush2.bf16.msra.mxu0 0
        %1307 = vmatprep.subr.bf16.mxu0 0
        %1308 = vmatpush2.bf16.msra.mxu0 0
        %1309 = vmatprep.subr.bf16.mxu0 0
        %1310 = vmatpush2.bf16.msra.mxu0 0
        %1311 = vmatprep.subr.bf16.mxu0 0
        %1312 = vmatpush2.bf16.msra.mxu0 0
        %1313 = vmatprep.subr.bf16.mxu0 0
        %1314 = vmatpush2.bf16.msra.mxu0 0
        %1315 = vmatprep.subr.bf16.mxu0 0
        %1316 = vmatpush2.bf16.msra.mxu0 0
        %1317 = vmatprep.subr.bf16.mxu0 0
        %1318 = vmatpush2.bf16.msra.mxu0 0
        %1319 = vmatprep.mubr.bf16.mxu0 0
        %1320 = vmatmul.mubr.bf16.gmra.mxu0 %v1282
        %v1321 = vpop.f32.mrf.mxu0
        %v1322 = vadd.f32 %v1185, %v1321
        %v1323 = vpop.f32.mrf.mxu0
        %v1324 = vpop.f32.mrf.mxu0
        %v1325 = vpop.f32.mrf.mxu0
        %1326 = vdwg.mxu0
        %v1328 = vsel %vm1187, %v1176, 0
        %v1331 = vsel %vm1191, %v1180, 0
        %1333 = vmatprep.subr.bf16.mxu0 0
        %1334 = vmatpush1.bf16.msra.mxu0 0
        %1335 = vmatprep.subr.bf16.mxu0 0
        %1336 = vmatpush1.bf16.msra.mxu0 0
        %1337 = vmatprep.subr.bf16.mxu0 0
        %1338 = vmatpush1.bf16.msra.mxu0 0
        %1339 = vmatprep.subr.bf16.mxu0 0
        %1340 = vmatpush1.bf16.msra.mxu0 0
        %1341 = vmatprep.subr.bf16.mxu0 0
        %1342 = vmatpush1.bf16.msra.mxu0 0
        %1343 = vmatprep.subr.bf16.mxu0 0
        %1344 = vmatpush1.bf16.msra.mxu0 0
        %1345 = vmatprep.subr.bf16.mxu0 0
        %1346 = vmatpush1.bf16.msra.mxu0 0
        %1347 = vmatprep.subr.bf16.mxu0 0
        %1348 = vmatpush1.bf16.msra.mxu0 %v1331
        %1349 = vmatprep.subr.bf16.mxu0 0
        %1350 = vmatpush2.bf16.msra.mxu0 0
        %1351 = vmatprep.subr.bf16.mxu0 0
        %1352 = vmatpush2.bf16.msra.mxu0 0
        %1353 = vmatprep.subr.bf16.mxu0 0
        %1354 = vmatpush2.bf16.msra.mxu0 0
        %1355 = vmatprep.subr.bf16.mxu0 0
        %1356 = vmatpush2.bf16.msra.mxu0 0
        %1357 = vmatprep.subr.bf16.mxu0 0
        %1358 = vmatpush2.bf16.msra.mxu0 0
        %1359 = vmatprep.subr.bf16.mxu0 0
        %1360 = vmatpush2.bf16.msra.mxu0 0
        %1361 = vmatprep.subr.bf16.mxu0 0
        %1362 = vmatpush2.bf16.msra.mxu0 0
        %1363 = vmatprep.subr.bf16.mxu0 0
        %1364 = vmatpush2.bf16.msra.mxu0 0
        %1365 = vmatprep.mubr.bf16.mxu0 0
        %1366 = vmatmul.mubr.bf16.gmra.mxu0 %v1328
        %v1367 = vpop.f32.mrf.mxu0
        %v1368 = vadd.f32 %v1185, %v1367
        %v1369 = vpop.f32.mrf.mxu0
        %v1370 = vpop.f32.mrf.mxu0
        %v1371 = vpop.f32.mrf.mxu0
        %1372 = vdwg.mxu0
        %v1373 = vsel %vm1187, %v1230, -inf
        %1374 = vmax.xlane.f32.xlu0 %v1373
        %v1375 = vpop.xlane.xlu0 %1374
        %v1376 = vsel %vm1187, %v1276, -inf
        %1377 = vmax.xlane.f32.xlu0 %v1376
        %v1378 = vpop.xlane.xlu0 %1377
        %v1379 = vsel %vm1187, %v1322, -inf
        %1380 = vmax.xlane.f32.xlu0 %v1379
        %v1381 = vpop.xlane.xlu0 %1380
        %v1382 = vsel %vm1187, %v1368, -inf
        %1383 = vmax.xlane.f32.xlu0 %v1382
        %v1384 = vpop.xlane.xlu0 %1383
        %v1385 = vsub.f32 %v1230, %v1375
        %v1386 = vsub.f32 %v1276, %v1378
        %v1387 = vsub.f32 %v1322, %v1381
        %v1388 = vsub.f32 %v1368, %v1384
        %v1389 = vmul.f32 %v1385, 1.442695
        %v1390 = vpow.pop %v1389
        %v1391 = vmul.f32 %v1386, 1.442695
        %v1392 = vpow.pop %v1391
        %v1393 = vmul.f32 %v1387, 1.442695
        %v1394 = vpow.pop %v1393
        %v1395 = vmul.f32 %v1388, 1.442695
        %v1396 = vpow.pop %v1395
        %v1397 = vsel %vm1187, %v1390, 0.0
        %1398 = vadd.xlane.f32.xlu0 %v1397
        %v1399 = vpop.xlane.xlu0 %1398
        %v1400 = vsel %vm1187, %v1392, 0.0
        %1401 = vadd.xlane.f32.xlu0 %v1400
        %v1402 = vpop.xlane.xlu0 %1401
        %v1403 = vsel %vm1187, %v1394, 0.0
        %1404 = vadd.xlane.f32.xlu0 %v1403
        %v1405 = vpop.xlane.xlu0 %1404
        %v1406 = vsel %vm1187, %v1396, 0.0
        %1407 = vadd.xlane.f32.xlu0 %v1406
        %v1408 = vpop.xlane.xlu0 %1407
        %v1409 = vpack.c.bf16 %v1390, %v1390
        %v1410 = vpack.c.bf16 %v1392, %v1392
        %v1411 = vpack.c.bf16 %v1394, %v1394
        %v1412 = vpack.c.bf16 %v1396, %v1396
        %v1413 = vld [vmem:[#allocation3] sm:$0xf]
        %v1414 = vld [vmem:[#allocation3 + $0x4] sm:$0xf]
        %v1415 = vld [vmem:[#allocation3 + $0x8] sm:$0xf]
        %v1416 = vld [vmem:[#allocation3 + $0xc] sm:$0xf]
        %v1418 = vsel %vm1187, %v1409, 0
        %v1421 = vsel %vm1191, %v1413, 0
        %1423 = vmatprep.subr.bf16.mxu0 0
        %1424 = vmatpush1.bf16.msra.mxu0 0
        %1425 = vmatprep.subr.bf16.mxu0 0
        %1426 = vmatpush1.bf16.msra.mxu0 0
        %1427 = vmatprep.subr.bf16.mxu0 0
        %1428 = vmatpush1.bf16.msra.mxu0 0
        %1429 = vmatprep.subr.bf16.mxu0 0
        %1430 = vmatpush1.bf16.msra.mxu0 0
        %1431 = vmatprep.subr.bf16.mxu0 0
        %1432 = vmatpush1.bf16.msra.mxu0 0
        %1433 = vmatprep.subr.bf16.mxu0 0
        %1434 = vmatpush1.bf16.msra.mxu0 0
        %1435 = vmatprep.subr.bf16.mxu0 0
        %1436 = vmatpush1.bf16.msra.mxu0 0
        %1437 = vmatprep.subr.bf16.mxu0 0
        %1438 = vmatpush1.bf16.msra.mxu0 %v1421
        %1439 = vmatprep.subr.bf16.mxu0 0
        %1440 = vmatpush2.bf16.msra.mxu0 0
        %1441 = vmatprep.subr.bf16.mxu0 0
        %1442 = vmatpush2.bf16.msra.mxu0 0
        %1443 = vmatprep.subr.bf16.mxu0 0
        %1444 = vmatpush2.bf16.msra.mxu0 0
        %1445 = vmatprep.subr.bf16.mxu0 0
        %1446 = vmatpush2.bf16.msra.mxu0 0
        %1447 = vmatprep.subr.bf16.mxu0 0
        %1448 = vmatpush2.bf16.msra.mxu0 0
        %1449 = vmatprep.subr.bf16.mxu0 0
        %1450 = vmatpush2.bf16.msra.mxu0 0
        %1451 = vmatprep.subr.bf16.mxu0 0
        %1452 = vmatpush2.bf16.msra.mxu0 0
        %1453 = vmatprep.subr.bf16.mxu0 0
        %1454 = vmatpush2.bf16.msra.mxu0 0
        %1455 = vmatprep.mubr.bf16.mxu0 0
        %1456 = vmatmul.mubr.bf16.gmra.mxu0 %v1418
        %v1457 = vpop.f32.mrf.mxu0
        %v1458 = vadd.f32 0.0, %v1457
        %v1459 = vpop.f32.mrf.mxu0
        %v1460 = vpop.f32.mrf.mxu0
        %v1461 = vpop.f32.mrf.mxu0
        %1462 = vdwg.mxu0
        %v1464 = vsel %vm1187, %v1410, 0
        %v1467 = vsel %vm1191, %v1414, 0
        %1469 = vmatprep.subr.bf16.mxu0 0
        %1470 = vmatpush1.bf16.msra.mxu0 0
        %1471 = vmatprep.subr.bf16.mxu0 0
        %1472 = vmatpush1.bf16.msra.mxu0 0
        %1473 = vmatprep.subr.bf16.mxu0 0
        %1474 = vmatpush1.bf16.msra.mxu0 0
        %1475 = vmatprep.subr.bf16.mxu0 0
        %1476 = vmatpush1.bf16.msra.mxu0 0
        %1477 = vmatprep.subr.bf16.mxu0 0
        %1478 = vmatpush1.bf16.msra.mxu0 0
        %1479 = vmatprep.subr.bf16.mxu0 0
        %1480 = vmatpush1.bf16.msra.mxu0 0
        %1481 = vmatprep.subr.bf16.mxu0 0
        %1482 = vmatpush1.bf16.msra.mxu0 0
        %1483 = vmatprep.subr.bf16.mxu0 0
        %1484 = vmatpush1.bf16.msra.mxu0 %v1467
        %1485 = vmatprep.subr.bf16.mxu0 0
        %1486 = vmatpush2.bf16.msra.mxu0 0
        %1487 = vmatprep.subr.bf16.mxu0 0
        %1488 = vmatpush2.bf16.msra.mxu0 0
        %1489 = vmatprep.subr.bf16.mxu0 0
        %1490 = vmatpush2.bf16.msra.mxu0 0
        %1491 = vmatprep.subr.bf16.mxu0 0
        %1492 = vmatpush2.bf16.msra.mxu0 0
        %1493 = vmatprep.subr.bf16.mxu0 0
        %1494 = vmatpush2.bf16.msra.mxu0 0
        %1495 = vmatprep.subr.bf16.mxu0 0
        %1496 = vmatpush2.bf16.msra.mxu0 0
        %1497 = vmatprep.subr.bf16.mxu0 0
        %1498 = vmatpush2.bf16.msra.mxu0 0
        %1499 = vmatprep.subr.bf16.mxu0 0
        %1500 = vmatpush2.bf16.msra.mxu0 0
        %1501 = vmatprep.mubr.bf16.mxu0 0
        %1502 = vmatmul.mubr.bf16.gmra.mxu0 %v1464
        %v1503 = vpop.f32.mrf.mxu0
        %v1504 = vadd.f32 0.0, %v1503
        %v1505 = vpop.f32.mrf.mxu0
        %v1506 = vpop.f32.mrf.mxu0
        %v1507 = vpop.f32.mrf.mxu0
        %1508 = vdwg.mxu0
        %v1510 = vsel %vm1187, %v1411, 0
        %v1513 = vsel %vm1191, %v1415, 0
        %1515 = vmatprep.subr.bf16.mxu0 0
        %1516 = vmatpush1.bf16.msra.mxu0 0
        %1517 = vmatprep.subr.bf16.mxu0 0
        %1518 = vmatpush1.bf16.msra.mxu0 0
        %1519 = vmatprep.subr.bf16.mxu0 0
        %1520 = vmatpush1.bf16.msra.mxu0 0
        %1521 = vmatprep.subr.bf16.mxu0 0
        %1522 = vmatpush1.bf16.msra.mxu0 0
        %1523 = vmatprep.subr.bf16.mxu0 0
        %1524 = vmatpush1.bf16.msra.mxu0 0
        %1525 = vmatprep.subr.bf16.mxu0 0
        %1526 = vmatpush1.bf16.msra.mxu0 0
        %1527 = vmatprep.subr.bf16.mxu0 0
        %1528 = vmatpush1.bf16.msra.mxu0 0
        %1529 = vmatprep.subr.bf16.mxu0 0
        %1530 = vmatpush1.bf16.msra.mxu0 %v1513
        %1531 = vmatprep.subr.bf16.mxu0 0
        %1532 = vmatpush2.bf16.msra.mxu0 0
        %1533 = vmatprep.subr.bf16.mxu0 0
        %1534 = vmatpush2.bf16.msra.mxu0 0
        %1535 = vmatprep.subr.bf16.mxu0 0
        %1536 = vmatpush2.bf16.msra.mxu0 0
        %1537 = vmatprep.subr.bf16.mxu0 0
        %1538 = vmatpush2.bf16.msra.mxu0 0
        %1539 = vmatprep.subr.bf16.mxu0 0
        %1540 = vmatpush2.bf16.msra.mxu0 0
        %1541 = vmatprep.subr.bf16.mxu0 0
        %1542 = vmatpush2.bf16.msra.mxu0 0
        %1543 = vmatprep.subr.bf16.mxu0 0
        %1544 = vmatpush2.bf16.msra.mxu0 0
        %1545 = vmatprep.subr.bf16.mxu0 0
        %1546 = vmatpush2.bf16.msra.mxu0 0
        %1547 = vmatprep.mubr.bf16.mxu0 0
        %1548 = vmatmul.mubr.bf16.gmra.mxu0 %v1510
        %v1549 = vpop.f32.mrf.mxu0
        %v1550 = vadd.f32 0.0, %v1549
        %v1551 = vpop.f32.mrf.mxu0
        %v1552 = vpop.f32.mrf.mxu0
        %v1553 = vpop.f32.mrf.mxu0
        %1554 = vdwg.mxu0
        %v1556 = vsel %vm1187, %v1412, 0
        %v1559 = vsel %vm1191, %v1416, 0
        %1561 = vmatprep.subr.bf16.mxu0 0
        %1562 = vmatpush1.bf16.msra.mxu0 0
        %1563 = vmatprep.subr.bf16.mxu0 0
        %1564 = vmatpush1.bf16.msra.mxu0 0
        %1565 = vmatprep.subr.bf16.mxu0 0
        %1566 = vmatpush1.bf16.msra.mxu0 0
        %1567 = vmatprep.subr.bf16.mxu0 0
        %1568 = vmatpush1.bf16.msra.mxu0 0
        %1569 = vmatprep.subr.bf16.mxu0 0
        %1570 = vmatpush1.bf16.msra.mxu0 0
        %1571 = vmatprep.subr.bf16.mxu0 0
        %1572 = vmatpush1.bf16.msra.mxu0 0
        %1573 = vmatprep.subr.bf16.mxu0 0
        %1574 = vmatpush1.bf16.msra.mxu0 0
        %1575 = vmatprep.subr.bf16.mxu0 0
        %1576 = vmatpush1.bf16.msra.mxu0 %v1559
        %1577 = vmatprep.subr.bf16.mxu0 0
        %1578 = vmatpush2.bf16.msra.mxu0 0
        %1579 = vmatprep.subr.bf16.mxu0 0
        %1580 = vmatpush2.bf16.msra.mxu0 0
        %1581 = vmatprep.subr.bf16.mxu0 0
        %1582 = vmatpush2.bf16.msra.mxu0 0
        %1583 = vmatprep.subr.bf16.mxu0 0
        %1584 = vmatpush2.bf16.msra.mxu0 0
        %1585 = vmatprep.subr.bf16.mxu0 0
        %1586 = vmatpush2.bf16.msra.mxu0 0
        %1587 = vmatprep.subr.bf16.mxu0 0
        %1588 = vmatpush2.bf16.msra.mxu0 0
        %1589 = vmatprep.subr.bf16.mxu0 0
        %1590 = vmatpush2.bf16.msra.mxu0 0
        %1591 = vmatprep.subr.bf16.mxu0 0
        %1592 = vmatpush2.bf16.msra.mxu0 0
        %1593 = vmatprep.mubr.bf16.mxu0 0
        %1594 = vmatmul.mubr.bf16.gmra.mxu0 %v1556
        %v1595 = vpop.f32.mrf.mxu0
        %v1596 = vadd.f32 0.0, %v1595
        %v1597 = vpop.f32.mrf.mxu0
        %v1598 = vpop.f32.mrf.mxu0
        %v1599 = vpop.f32.mrf.mxu0
        %1600 = vdwg.mxu0
        %v1601 = vrcp.pop %v1399
        %v1602 = vrcp.pop %v1402
        %v1603 = vrcp.pop %v1405
        %v1604 = vrcp.pop %v1408
        %v1605 = vmul.f32 %v1458, %v1601
        %v1606 = vmul.f32 %v1504, %v1602
        %v1607 = vmul.f32 %v1550, %v1603
        %v1608 = vmul.f32 %v1596, %v1604
        %1610 = vrot.lane.b32.xlu0 %v1606, 8
        %v1611 = vpop.permute.xlu0 %1610
        %1614 = vrot.lane.b32.xlu0 %v1607, 16
        %v1615 = vpop.permute.xlu0 %1614
        %1618 = vrot.lane.b32.xlu0 %v1608, 24
        %v1619 = vpop.permute.xlu0 %1618
        %v1621 = vsel %vm1187, %v1605, %v1611
        %vm1622 = vcmask 130048
        %v1623 = vsel %vm1622, %v1621, %v1615
        %vm1624 = vcmask 195584
        %v1625 = vsel %vm1624, %v1623, %v1619
        %v1626 = vpack.c.bf16 %v1625, %v1625
        %v1627 = vld [vmem:[%s10] sm:$0xf]
        %v1628 = vld [vmem:[%s10 + $0x4] sm:$0xf]
        %v1629 = vld [vmem:[%s10 + $0x8] sm:$0xf]
        %v1630 = vld [vmem:[%s10 + $0xc] sm:$0xf]
        %v1631 = vld [vmem:[%s11] sm:$0x1]
        %v1633 = vlaneseq
        %v1634 = vshrl.u32 %v1633, 7
        %v1635 = vsub.s32 0, %v1634
        %v1636 = vrot.slane %v1631, %v1635
        %v1642 = vunpack.c.l.b16 %v1627
        %v1643 = vunpack.c.l.b16 %v1628
        %v1644 = vunpack.c.l.b16 %v1629
        %v1645 = vunpack.c.l.b16 %v1630
        %v1646 = vpack.c.b16 %v1643, %v1642
        %v1647 = vpack.c.b16 %v1645, %v1644
        %v1651 = vsel %vm1066, %v1626, 0
        %1653 = vmatprep.subr.bf16.mxu0 0
        %1654 = vmatpush1.bf16.msra.mxu0 0
        %1655 = vmatprep.subr.bf16.mxu0 0
        %1656 = vmatpush1.bf16.msra.mxu0 0
        %1657 = vmatprep.subr.bf16.mxu0 0
        %1658 = vmatpush1.bf16.msra.mxu0 0
        %1659 = vmatprep.subr.bf16.mxu0 0
        %1660 = vmatpush1.bf16.msra.mxu0 0
        %1661 = vmatprep.subr.bf16.mxu0 0
        %1662 = vmatpush1.bf16.msra.mxu0 0
        %1663 = vmatprep.subr.bf16.mxu0 0
        %1664 = vmatpush1.bf16.msra.mxu0 0
        %1665 = vmatprep.subr.bf16.mxu0 0
        %1666 = vmatpush1.bf16.msra.mxu0 %v1647
        %1667 = vmatprep.subr.bf16.mxu0 0
        %1668 = vmatpush1.bf16.msra.mxu0 %v1646
        %1669 = vmatprep.subr.bf16.mxu0 0
        %1670 = vmatpush2.bf16.msra.mxu0 0
        %1671 = vmatprep.subr.bf16.mxu0 0
        %1672 = vmatpush2.bf16.msra.mxu0 0
        %1673 = vmatprep.subr.bf16.mxu0 0
        %1674 = vmatpush2.bf16.msra.mxu0 0
        %1675 = vmatprep.subr.bf16.mxu0 0
        %1676 = vmatpush2.bf16.msra.mxu0 0
        %1677 = vmatprep.subr.bf16.mxu0 0
        %1678 = vmatpush2.bf16.msra.mxu0 0
        %1679 = vmatprep.subr.bf16.mxu0 0
        %1680 = vmatpush2.bf16.msra.mxu0 0
        %1681 = vmatprep.subr.bf16.mxu0 0
        %1682 = vmatpush2.bf16.msra.mxu0 0
        %1683 = vmatprep.subr.bf16.mxu0 0
        %1684 = vmatpush2.bf16.msra.mxu0 0
        %1685 = vmatprep.mubr.bf16.mxu0 0
        %1686 = vmatmul.mubr.bf16.gmra.mxu0 %v1651
        %v1687 = vpop.f32.mrf.mxu0
        %v1688 = vadd.f32 %v1636, %v1687
        %v1689 = vpop.f32.mrf.mxu0
        %v1690 = vpop.f32.mrf.mxu0
        %v1691 = vpop.f32.mrf.mxu0
        %1692 = vdwg.mxu0
        %v1693 = vadd.f32 %v1688, %v1063
        %v1694 = vld [vmem:[%s12] sm:$0x1]
        %v1695 = vld [vmem:[%s13] sm:$0x1]
        %v1696 = vsel %vm1066, %v1693, 0.0
        %1697 = vadd.xlane.f32.xlu0 %v1696
        %v1698 = vpop.xlane.xlu0 %1697
        %v1699 = vmul.f32 %v1698, %v1070
        %v1700 = vsub.f32 %v1693, %v1699
        %v1701 = vmul.f32 %v1700, %v1700
        %v1702 = vsel %vm1066, %v1701, 0.0
        %1703 = vadd.xlane.f32.xlu0 %v1702
        %v1704 = vpop.xlane.xlu0 %1703
        %v1705 = vmul.f32 %v1704, %v1070
        %v1706 = vadd.f32 %v1705, 1e-06
        %v1707 = vrsqrt.pop %v1706
        %v1708 = vmul.f32 %v1700, %v1707
        %v1710 = vlaneseq
        %v1711 = vshrl.u32 %v1710, 7
        %v1712 = vsub.s32 0, %v1711
        %v1713 = vrot.slane %v1694, %v1712
        %v1715 = vmul.f32 %v1708, %v1713
        %v1717 = vlaneseq
        %v1718 = vshrl.u32 %v1717, 7
        %v1719 = vsub.s32 0, %v1718
        %v1720 = vrot.slane %v1695, %v1719
        %v1722 = vadd.f32 %v1715, %v1720
        %v1723 = vpack.c.bf16 %v1722, %v1722
        %v1724 = vld [vmem:[#allocation16] sm:$0xf]
        %v1725 = vld [vmem:[#allocation16 + $0x4] sm:$0xf]
        %v1726 = vld [vmem:[#allocation16 + $0x8] sm:$0xf]
        %v1727 = vld [vmem:[#allocation16 + $0xc] sm:$0xf]
        %v1728 = vld [vmem:[%s15] sm:$0x1]
        %v1730 = vlaneseq
        %v1731 = vshrl.u32 %v1730, 7
        %v1732 = vsub.s32 0, %v1731
        %v1733 = vrot.slane %v1728, %v1732
        %v1739 = vunpack.c.l.b16 %v1724
        %v1740 = vunpack.c.l.b16 %v1725
        %v1741 = vunpack.c.l.b16 %v1726
        %v1742 = vunpack.c.l.b16 %v1727
        %v1743 = vpack.c.b16 %v1740, %v1739
        %v1744 = vpack.c.b16 %v1742, %v1741
        %v1748 = vsel %vm1066, %v1723, 0
        %1750 = vmatprep.subr.bf16.mxu0 0
        %1751 = vmatpush1.bf16.msra.mxu0 0
        %1752 = vmatprep.subr.bf16.mxu0 0
        %1753 = vmatpush1.bf16.msra.mxu0 0
        %1754 = vmatprep.subr.bf16.mxu0 0
        %1755 = vmatpush1.bf16.msra.mxu0 0
        %1756 = vmatprep.subr.bf16.mxu0 0
        %1757 = vmatpush1.bf16.msra.mxu0 0
        %1758 = vmatprep.subr.bf16.mxu0 0
        %1759 = vmatpush1.bf16.msra.mxu0 0
        %1760 = vmatprep.subr.bf16.mxu0 0
        %1761 = vmatpush1.bf16.msra.mxu0 0
        %1762 = vmatprep.subr.bf16.mxu0 0
        %1763 = vmatpush1.bf16.msra.mxu0 %v1744
        %1764 = vmatprep.subr.bf16.mxu0 0
        %1765 = vmatpush1.bf16.msra.mxu0 %v1743
        %1766 = vmatprep.subr.bf16.mxu0 0
        %1767 = vmatpush2.bf16.msra.mxu0 0
        %1768 = vmatprep.subr.bf16.mxu0 0
        %1769 = vmatpush2.bf16.msra.mxu0 0
        %1770 = vmatprep.subr.bf16.mxu0 0
        %1771 = vmatpush2.bf16.msra.mxu0 0
        %1772 = vmatprep.subr.bf16.mxu0 0
        %1773 = vmatpush2.bf16.msra.mxu0 0
        %1774 = vmatprep.subr.bf16.mxu0 0
        %1775 = vmatpush2.bf16.msra.mxu0 0
        %1776 = vmatprep.subr.bf16.mxu0 0
        %1777 = vmatpush2.bf16.msra.mxu0 0
        %1778 = vmatprep.subr.bf16.mxu0 0
        %1779 = vmatpush2.bf16.msra.mxu0 0
        %1780 = vmatprep.subr.bf16.mxu0 0
        %1781 = vmatpush2.bf16.msra.mxu0 0
        %1782 = vmatprep.mubr.bf16.mxu0 0
        %1783 = vmatmul.mubr.bf16.gmra.mxu0 %v1748
        %v1784 = vpop.f32.mrf.mxu0
        %v1785 = vadd.f32 %v1733, %v1784
        %v1786 = vpop.f32.mrf.mxu0
        %v1787 = vpop.f32.mrf.mxu0
        %v1788 = vpop.f32.mrf.mxu0
        %1789 = vdwg.mxu0
        %v1790 = vmul.f32 %v1785, 0.5
        %v1791 = vmul.f32 %v1785, 0.044715
        %v1792 = vmul.f32 %v1791, %v1785
        %v1793 = vmul.f32 %v1792, %v1785
        %v1794 = vadd.f32 %v1785, %v1793
        %v1795 = vmul.f32 %v1794, 0.7978846
        %v1796 = vtanh.pop %v1795
        %v1797 = vadd.f32 %v1796, 1.0
        %v1798 = vmul.f32 %v1790, %v1797
        %v1799 = vpack.c.bf16 %v1798, %v1798
        %v1800 = vld [vmem:[%s16] sm:$0xf]
        %v1801 = vld [vmem:[%s16 + $0x4] sm:$0xf]
        %v1802 = vld [vmem:[%s16 + $0x8] sm:$0xf]
        %v1803 = vld [vmem:[%s16 + $0xc] sm:$0xf]
        %v1804 = vld [vmem:[%s16 + $0x10] sm:$0xf]
        %v1805 = vld [vmem:[%s16 + $0x14] sm:$0xf]
        %v1806 = vld [vmem:[%s16 + $0x18] sm:$0xf]
        %v1807 = vld [vmem:[%s16 + $0x1c] sm:$0xf]
        %v1808 = vld [vmem:[%s17] sm:$0x1]
        %v1810 = vlaneseq
        %v1811 = vshrl.u32 %v1810, 7
        %v1812 = vsub.s32 0, %v1811
        %v1813 = vrot.slane %v1808, %v1812
        %v1823 = vunpack.c.l.b16 %v1800
        %v1824 = vunpack.c.l.b16 %v1801
        %v1825 = vunpack.c.l.b16 %v1802
        %v1826 = vunpack.c.l.b16 %v1803
        %v1827 = vunpack.c.l.b16 %v1804
        %v1828 = vunpack.c.l.b16 %v1805
        %v1829 = vunpack.c.l.b16 %v1806
        %v1830 = vunpack.c.l.b16 %v1807
        %v1831 = vpack.c.b16 %v1824, %v1823
        %v1832 = vpack.c.b16 %v1826, %v1825
        %v1833 = vpack.c.b16 %v1828, %v1827
        %v1834 = vpack.c.b16 %v1830, %v1829
        %vm1839 = vcmask 523264
        %v1841 = vsel %vm1839, %v1799, 0
        %1843 = vmatprep.subr.bf16.mxu0 0
        %1844 = vmatpush1.bf16.msra.mxu0 0
        %1845 = vmatprep.subr.bf16.mxu0 0
        %1846 = vmatpush1.bf16.msra.mxu0 0
        %1847 = vmatprep.subr.bf16.mxu0 0
        %1848 = vmatpush1.bf16.msra.mxu0 0
        %1849 = vmatprep.subr.bf16.mxu0 0
        %1850 = vmatpush1.bf16.msra.mxu0 0
        %1851 = vmatprep.subr.bf16.mxu0 0
        %1852 = vmatpush1.bf16.msra.mxu0 %v1834
        %1853 = vmatprep.subr.bf16.mxu0 0
        %1854 = vmatpush1.bf16.msra.mxu0 %v1833
        %1855 = vmatprep.subr.bf16.mxu0 0
        %1856 = vmatpush1.bf16.msra.mxu0 %v1832
        %1857 = vmatprep.subr.bf16.mxu0 0
        %1858 = vmatpush1.bf16.msra.mxu0 %v1831
        %1859 = vmatprep.subr.bf16.mxu0 0
        %1860 = vmatpush2.bf16.msra.mxu0 0
        %1861 = vmatprep.subr.bf16.mxu0 0
        %1862 = vmatpush2.bf16.msra.mxu0 0
        %1863 = vmatprep.subr.bf16.mxu0 0
        %1864 = vmatpush2.bf16.msra.mxu0 0
        %1865 = vmatprep.subr.bf16.mxu0 0
        %1866 = vmatpush2.bf16.msra.mxu0 0
        %1867 = vmatprep.subr.bf16.mxu0 0
        %1868 = vmatpush2.bf16.msra.mxu0 0
        %1869 = vmatprep.subr.bf16.mxu0 0
        %1870 = vmatpush2.bf16.msra.mxu0 0
        %1871 = vmatprep.subr.bf16.mxu0 0
        %1872 = vmatpush2.bf16.msra.mxu0 0
        %1873 = vmatprep.subr.bf16.mxu0 0
        %1874 = vmatpush2.bf16.msra.mxu0 0
        %1875 = vmatprep.mubr.bf16.mxu0 0
        %1876 = vmatmul.mubr.bf16.gmra.mxu0 %v1841
        %v1877 = vpop.f32.mrf.mxu0
        %v1878 = vadd.f32 %v1813, %v1877
        %v1879 = vpop.f32.mrf.mxu0
        %v1880 = vpop.f32.mrf.mxu0
        %v1881 = vpop.f32.mrf.mxu0
        %1882 = vdwg.mxu0
        %v1883 = vadd.f32 %v1878, %v1693
        %1884 = vst.msk [vmem:[%s715] sm:$0xff] %vm1066, %v1883
        %s1885 = sand.u32 %s451, 1
        %s1886 = scalar_lea.sflag [#allocation6], %s1885
        %s1887 = sand.u32 %s451, 1
        %s1888 = smul.addr %s1887, 8
        %s1889 = scalar_lea.vmem [#allocation18], %s1888
        // Predicated region
        $region129: #{tpu_custom_call.1} parent=91 // pred_check
          %p1890 = pneg %p461
        $region130: #{tpu_custom_call.1} parent=91 // pred_check_branch
          %1892 = sbr.rel (%p1890) target = $region132
        $region131: #{tpu_custom_call.1} parent=91 // pred_region
          %s1894 = ssub.s32 128, 128
          %1895 = vsyncadd %s1886, %s1894
          %s1896 = sadd.s32 %s46, %s45
          %s1897 = smul.addr %s1896, 128
          %s1898 = scalar_lea.hbm %s18, %s1897
          %s1900 = sshll.u32 %s1889, 4
          %s1901 = int_to_ptr.vmem [resolvable:$true] %s1900
          %1903 = dma.vmem_to_hbm [thread:$0]  %s1901, 128, %s1898, %s1886
        $region132: #{tpu_custom_call.1} parent=91 // pred_fallthru
          _
      $region92: #{tpu_custom_call.1} parent=5 // pred_fallthru
        _
      %p1904 = scmp.le.s32.totalorder 2, %s36
      // Predicated region
      $region133: #{tpu_custom_call.1} parent=5 // pred_check
        %p1905 = pneg %p1904
      $region134: #{tpu_custom_call.1} parent=5 // pred_check_branch
        %1907 = sbr.rel (%p1905) target = $region136
      $region135: #{tpu_custom_call.1} parent=5 // pred_region
        %s1908 = ssub.s32 %s36, 2
        // Predicated region
        $region137: #{tpu_custom_call.1} parent=135 // pred_check
          %p1909 = pneg %p467
        $region138: #{tpu_custom_call.1} parent=135 // pred_check_branch
          %1911 = sbr.rel (%p1909) target = $region140
        $region139: #{tpu_custom_call.1} parent=135 // pred_region
          %s1912 = sand.u32 %s452, 1
          %s1913 = scalar_lea.sflag [#allocation6], %s1912
          %s1914 = sand.u32 %s452, 1
          %s1915 = smul.addr %s1914, 8
          %s1916 = scalar_lea.vmem [#allocation18], %s1915
          %1917 = dma.done %s1913, 128
        $region140: #{tpu_custom_call.1} parent=135 // pred_fallthru
          _
      $region136: #{tpu_custom_call.1} parent=5 // pred_fallthru
        _
    $region6: #{tpu_custom_call.1} parent=1 // loop_footer
      %s40 = sadd.s32 1, %s36
    $region7: #{tpu_custom_call.1} parent=1 // loop_footer_branch
      %35 = sbr.rel target = $region3
    $region8: #{tpu_custom_call.1} parent=1 // loop_exit
      _
    %1918 = vsyncpa [#allocation5], 1
    %s1919 = scalar_lea.sflag [#allocation5], 1
    %1920 = vsyncpa %s1919, 1
    %1921 = vsyncpa [#allocation8], 1
    %s1922 = scalar_lea.sflag [#allocation8], 1
    %1923 = vsyncpa %s1922, 1
    %1924 = vsyncpa [#allocation11], 1
    %1925 = vsyncpa [#allocation14], 1
    %1926 = vsyncpa [#allocation17], 1
    %1927 = vsyncpa [#allocation6], 1
    %s1928 = scalar_lea.sflag [#allocation6], 1
    %1929 = vsyncpa %s1928, 1

</llo_original>
